<compile_context>
chip_gen: v5e
topology: v5e:2x2
jax: 0.10.0
libtpu: 0.0.40
codegen_flags: <defaults>
</compile_context>

<pallas_src>
import math

import jax
import jax.numpy as jnp
from jax.experimental import pallas as pl
from jax.experimental.pallas import tpu as pltpu

# ----------------------------- tiny BERT config -----------------------------
HIDDEN = 32
HEADS = 4
HEAD_DIM = HIDDEN // HEADS
LAYERS = 2
INTERMEDIATE = 64
VOCAB = 100
MAX_POS = 64
TYPE_VOCAB = 2
NUM_LABELS = 2
LN_EPS = 1e-12
MASK_NEG = -1e9


def _gelu(x):
    # TODO(synk): HF BERT uses exact (erf) GELU; tanh approximation used here
    # for robust Mosaic lowering -- numerically very close.
    c = math.sqrt(2.0 / math.pi)
    return 0.5 * x * (1.0 + jnp.tanh(c * (x + 0.044715 * x * x * x)))


# ----------------------- fused encoder Pallas kernel ------------------------

def _bert_encoder_kernel(x_ref, bias_ref, eg_ref, eb_ref,
                         qkv_w_ref, qkv_b_ref, ao_w_ref, ao_b_ref,
                         aln_g_ref, aln_b_ref,
                         fi_w_ref, fi_b_ref, fo_w_ref, fo_b_ref,
                         oln_g_ref, oln_b_ref,
                         out_ref):
    """One grid step == one batch element: the full encoder stack in VMEM."""

    def ln(x, g, b):                                   # float32 LayerNorm
        mu = jnp.mean(x, axis=-1, keepdims=True)
        xc = x - mu
        var = jnp.mean(xc * xc, axis=-1, keepdims=True)
        return xc * jax.lax.rsqrt(var + LN_EPS) * g + b

    def mm(a, w):                                      # bf16 MXU, f32 accumulate
        return jnp.dot(a.astype(jnp.bfloat16), w.astype(jnp.bfloat16),
                       preferred_element_type=jnp.float32)

    h = ln(x_ref[...], eg_ref[...], eb_ref[...])       # (S, H) float32
    bias = bias_ref[...]                               # (1, S) additive key mask
    scale = 1.0 / math.sqrt(HEAD_DIM)

    for l in range(LAYERS):                            # static unroll
        # --- fused QKV projection: one (S,H) x (H,3H) matmul ---
        qkv = mm(h, qkv_w_ref[l]) + qkv_b_ref[l]       # (S, 3H)

        # --- multi-head attention on VMEM-resident column slices ---
        heads = []
        for hd in range(HEADS):
            q = qkv[:, hd * HEAD_DIM:(hd + 1) * HEAD_DIM]
            k = qkv[:, HIDDEN + hd * HEAD_DIM:HIDDEN + (hd + 1) * HEAD_DIM]
            v = qkv[:, 2 * HIDDEN + hd * HEAD_DIM:2 * HIDDEN + (hd + 1) * HEAD_DIM]
            s = jax.lax.dot_general(                   # (S, S) scores
                q.astype(jnp.bfloat16), k.astype(jnp.bfloat16),
                dimension_numbers=(((1,), (1,)), ((), ())),
                preferred_element_type=jnp.float32)
            s = s * scale + bias
            s = s - jnp.max(s, axis=-1, keepdims=True)         # f32 softmax
            p = jnp.exp(s)
            p = p * pl.reciprocal(jnp.sum(p, axis=-1, keepdims=True), approx=True)
            heads.append(mm(p, v))                     # (S, D)
        ctx = jnp.concatenate(heads, axis=-1)          # (S, H) merge heads in VMEM

        # --- attention output projection + residual LayerNorm ---
        attn = mm(ctx, ao_w_ref[l]) + ao_b_ref[l]
        h1 = ln(attn + h, aln_g_ref[l], aln_b_ref[l])

        # --- FFN (GELU) + residual LayerNorm ---
        inter = _gelu(mm(h1, fi_w_ref[l]) + fi_b_ref[l])       # (S, I) f32
        ffn = mm(inter, fo_w_ref[l]) + fo_b_ref[l]
        h = ln(ffn + h1, oln_g_ref[l], oln_b_ref[l])

    out_ref[...] = h.astype(out_ref.dtype)


def _full_spec(arr):
    nd = arr.ndim
    return pl.BlockSpec(arr.shape, lambda b, _nd=nd: (0,) * _nd)


def bert_encoder(emb, mask_bias, p):
    """emb:(B,S,H) f32, mask_bias:(B,1,S) additive f32 -> hidden states (B,S,H)."""
    B, S, H = emb.shape
    weight_args = (p["emb_ln_g"], p["emb_ln_b"],
                   p["qkv_w"], p["qkv_b"], p["ao_w"], p["ao_b"],
                   p["attn_ln_g"], p["attn_ln_b"],
                   p["inter_w"], p["inter_b"], p["out_w"], p["out_b"],
                   p["out_ln_g"], p["out_ln_b"])
    in_specs = ([pl.BlockSpec((None, S, H), lambda b: (b, 0, 0)),
                 pl.BlockSpec((None, 1, S), lambda b: (b, 0, 0))]
                + [_full_spec(w) for w in weight_args])
    return pl.pallas_call(
        _bert_encoder_kernel,
        out_shape=jax.ShapeDtypeStruct((B, S, H), jnp.float32),
        grid=(B,),
        in_specs=in_specs,
        out_specs=pl.BlockSpec((None, S, H), lambda b: (b, 0, 0)),
        compiler_params=pltpu.CompilerParams(
            dimension_semantics=("parallel",)),   # batch shards across TCs (v7x)
    )(emb, mask_bias, *weight_args)


# ------------------------------- parameters ---------------------------------

def init_params(key):
    def nrm(k, shape):
        return 0.02 * jax.random.normal(k, shape, dtype=jnp.float32)

    ks = iter(jax.random.split(key, 9))
    f32 = jnp.float32
    return {
        "word_emb": nrm(next(ks), (VOCAB, HIDDEN)),
        "pos_emb": nrm(next(ks), (MAX_POS, HIDDEN)),
        "type_emb": nrm(next(ks), (TYPE_VOCAB, HIDDEN)),
        "emb_ln_g": jnp.ones((1, HIDDEN), f32),
        "emb_ln_b": jnp.zeros((1, HIDDEN), f32),
        # per-layer params stacked on a leading LAYERS axis (q/k/v fused -> 3H)
        "qkv_w": nrm(next(ks), (LAYERS, HIDDEN, 3 * HIDDEN)),
        "qkv_b": jnp.zeros((LAYERS, 1, 3 * HIDDEN), f32),
        "ao_w": nrm(next(ks), (LAYERS, HIDDEN, HIDDEN)),
        "ao_b": jnp.zeros((LAYERS, 1, HIDDEN), f32),
        "attn_ln_g": jnp.ones((LAYERS, 1, HIDDEN), f32),
        "attn_ln_b": jnp.zeros((LAYERS, 1, HIDDEN), f32),
        "inter_w": nrm(next(ks), (LAYERS, HIDDEN, INTERMEDIATE)),
        "inter_b": jnp.zeros((LAYERS, 1, INTERMEDIATE), f32),
        "out_w": nrm(next(ks), (LAYERS, INTERMEDIATE, HIDDEN)),
        "out_b": jnp.zeros((LAYERS, 1, HIDDEN), f32),
        "out_ln_g": jnp.ones((LAYERS, 1, HIDDEN), f32),
        "out_ln_b": jnp.zeros((LAYERS, 1, HIDDEN), f32),
        "pooler_w": nrm(next(ks), (HIDDEN, HIDDEN)),
        "pooler_b": jnp.zeros((1, HIDDEN), f32),
        "cls_w": nrm(next(ks), (HIDDEN, NUM_LABELS)),
        "cls_b": jnp.zeros((1, NUM_LABELS), f32),
    }


# --------------------------------- forward ----------------------------------

def bert_forward(params, input_ids, pad_mask, labels):
    B, S = input_ids.shape

    # Embedding gathers are glue; the broadcasted sum is fused by XLA and fed
    # straight into the fused encoder kernel (no materialized residual tensor).
    we = jnp.take(params["word_emb"], input_ids, axis=0)                # (B,S,H)
    pe = params["pos_emb"][:S][None, :, :]                              # (1,S,H)
    # token_type_ids default to zeros (matches HF when not passed).
    te = jnp.take(params["type_emb"], jnp.zeros_like(input_ids), axis=0)
    emb = we + pe + te                                                  # (B,S,H)

    # HF-style additive key mask, shaped (B,1,S) for per-batch kernel blocks.
    mask_bias = ((1.0 - pad_mask.astype(jnp.float32)) * MASK_NEG).reshape(B, 1, S)

    # Single fused Pallas kernel: embedding LN + all transformer layers.
    h = bert_encoder(emb, mask_bias, params)                            # (B,S,H)

    # Pooler (CLS) + classifier + cross-entropy: tiny -> plain JAX (per review).
    cls = h[:, 0, :]                                                    # (B,H)
    pooled = jnp.tanh(cls @ params["pooler_w"] + params["pooler_b"])
    logits = pooled @ params["cls_w"] + params["cls_b"]                 # (B,2)
    logp = jax.nn.log_softmax(logits, axis=-1)
    loss = -jnp.mean(jnp.take_along_axis(logp, labels[:, None], axis=1))
    return loss, logits


# ----------------------------------- main ------------------------------------

if __name__ == "__main__":
    B, S = 2, 8
    key = jax.random.PRNGKey(0)
    k_param, k_ids, k_lab = jax.random.split(key, 3)

    params = init_params(k_param)
    input_ids = jax.random.randint(k_ids, (B, S), 0, VOCAB, dtype=jnp.int32)
    pad_mask = jnp.ones((B, S), jnp.int32).at[1, -2:].set(0)   # last 2 tokens padded
    labels = jax.random.randint(k_lab, (B,), 0, NUM_LABELS, dtype=jnp.int32)

    loss, logits = jax.jit(bert_forward)(params, input_ids, pad_mask, labels)
    jax.block_until_ready((loss, logits))
    assert logits.shape == (B, NUM_LABELS) and loss.shape == ()
    assert bool(jnp.isfinite(loss)) and bool(jnp.all(jnp.isfinite(logits)))
    print("KERNEL_OK")
</pallas_src>

<mosaic_0001>
module attributes {stable_mosaic.version = 11 : i64} {
  func.func @_bert_encoder_kernel(%arg0: i32, %arg1: memref<1x8x32xf32, #tpu.memory_space<vmem>>, %arg2: memref<1x1x8xf32, #tpu.memory_space<vmem>>, %arg3: memref<1x32xf32, #tpu.memory_space<vmem>>, %arg4: memref<1x32xf32, #tpu.memory_space<vmem>>, %arg5: memref<2x32x96xf32, #tpu.memory_space<vmem>>, %arg6: memref<2x1x96xf32, #tpu.memory_space<vmem>>, %arg7: memref<2x32x32xf32, #tpu.memory_space<vmem>>, %arg8: memref<2x1x32xf32, #tpu.memory_space<vmem>>, %arg9: memref<2x1x32xf32, #tpu.memory_space<vmem>>, %arg10: memref<2x1x32xf32, #tpu.memory_space<vmem>>, %arg11: memref<2x32x64xf32, #tpu.memory_space<vmem>>, %arg12: memref<2x1x64xf32, #tpu.memory_space<vmem>>, %arg13: memref<2x64x32xf32, #tpu.memory_space<vmem>>, %arg14: memref<2x1x32xf32, #tpu.memory_space<vmem>>, %arg15: memref<2x1x32xf32, #tpu.memory_space<vmem>>, %arg16: memref<2x1x32xf32, #tpu.memory_space<vmem>>, %arg17: memref<1x8x32xf32, #tpu.memory_space<vmem>>) attributes {dimension_semantics = [#tpu.dimension_semantics<parallel>], iteration_bounds = array<i64: 2>, scalar_prefetch = 0 : i64, scratch_operands = 0 : i64, tpu.core_type = #tpu.core_type<tc>, window_params = [{transform_indices = @transform_0, window_bounds = array<i64: 1, 8, 32>}, {transform_indices = @transform_1, window_bounds = array<i64: 1, 1, 8>}, {pipeline_mode = #tpu.pipeline_mode<synchronous>, transform_indices = @transform_2, window_bounds = array<i64: 1, 32>}, {pipeline_mode = #tpu.pipeline_mode<synchronous>, transform_indices = @transform_3, window_bounds = array<i64: 1, 32>}, {pipeline_mode = #tpu.pipeline_mode<synchronous>, transform_indices = @transform_4, window_bounds = array<i64: 2, 32, 96>}, {pipeline_mode = #tpu.pipeline_mode<synchronous>, transform_indices = @transform_5, window_bounds = array<i64: 2, 1, 96>}, {pipeline_mode = #tpu.pipeline_mode<synchronous>, transform_indices = @transform_6, window_bounds = array<i64: 2, 32, 32>}, {pipeline_mode = #tpu.pipeline_mode<synchronous>, transform_indices = @transform_7, window_bounds = array<i64: 2, 1, 32>}, {pipeline_mode = #tpu.pipeline_mode<synchronous>, transform_indices = @transform_8, window_bounds = array<i64: 2, 1, 32>}, {pipeline_mode = #tpu.pipeline_mode<synchronous>, transform_indices = @transform_9, window_bounds = array<i64: 2, 1, 32>}, {pipeline_mode = #tpu.pipeline_mode<synchronous>, transform_indices = @transform_10, window_bounds = array<i64: 2, 32, 64>}, {pipeline_mode = #tpu.pipeline_mode<synchronous>, transform_indices = @transform_11, window_bounds = array<i64: 2, 1, 64>}, {pipeline_mode = #tpu.pipeline_mode<synchronous>, transform_indices = @transform_12, window_bounds = array<i64: 2, 64, 32>}, {pipeline_mode = #tpu.pipeline_mode<synchronous>, transform_indices = @transform_13, window_bounds = array<i64: 2, 1, 32>}, {pipeline_mode = #tpu.pipeline_mode<synchronous>, transform_indices = @transform_14, window_bounds = array<i64: 2, 1, 32>}, {pipeline_mode = #tpu.pipeline_mode<synchronous>, transform_indices = @transform_15, window_bounds = array<i64: 2, 1, 32>}, {transform_indices = @transform_16, window_bounds = array<i64: 1, 8, 32>}]} {
    %c0 = arith.constant 0 : index
    %c0_0 = arith.constant 0 : index
    %c0_1 = arith.constant 0 : index
    %0 = vector.load %arg1[%c0, %c0_0, %c0_1] : memref<1x8x32xf32, #tpu.memory_space<vmem>>, vector<1x8x32xf32>
    %1 = vector.shape_cast %0 : vector<1x8x32xf32> to vector<8x32xf32>
    %c0_2 = arith.constant 0 : index
    %c0_3 = arith.constant 0 : index
    %2 = vector.load %arg3[%c0_2, %c0_3] : memref<1x32xf32, #tpu.memory_space<vmem>>, vector<1x32xf32>
    %c0_4 = arith.constant 0 : index
    %c0_5 = arith.constant 0 : index
    %3 = vector.load %arg4[%c0_4, %c0_5] : memref<1x32xf32, #tpu.memory_space<vmem>>, vector<1x32xf32>
    %cst = arith.constant dense<0.000000e+00> : vector<8xf32>
    %4 = vector.multi_reduction <add>, %1, %cst [1] : vector<8x32xf32> to vector<8xf32>
    %5 = vector.shape_cast %4 : vector<8xf32> to vector<8x1xf32>
    %cst_6 = arith.constant 3.200000e+01 : f32
    %6 = vector.broadcast %cst_6 : f32 to vector<8x1xf32>
    %7 = arith.divf %5, %6 : vector<8x1xf32>
    %8 = vector.broadcast %7 : vector<8x1xf32> to vector<8x32xf32>
    %9 = arith.subf %1, %8 : vector<8x32xf32>
    %10 = arith.mulf %9, %9 : vector<8x32xf32>
    %cst_7 = arith.constant dense<0.000000e+00> : vector<8xf32>
    %11 = vector.multi_reduction <add>, %10, %cst_7 [1] : vector<8x32xf32> to vector<8xf32>
    %12 = vector.shape_cast %11 : vector<8xf32> to vector<8x1xf32>
    %cst_8 = arith.constant 3.200000e+01 : f32
    %13 = vector.broadcast %cst_8 : f32 to vector<8x1xf32>
    %14 = arith.divf %12, %13 : vector<8x1xf32>
    %cst_9 = arith.constant 9.99999996E-13 : f32
    %15 = vector.broadcast %cst_9 : f32 to vector<8x1xf32>
    %16 = arith.addf %14, %15 : vector<8x1xf32>
    %17 = math.rsqrt %16 : vector<8x1xf32>
    %18 = vector.broadcast %17 : vector<8x1xf32> to vector<8x32xf32>
    %19 = arith.mulf %9, %18 : vector<8x32xf32>
    %20 = vector.broadcast %2 : vector<1x32xf32> to vector<8x32xf32>
    %21 = arith.mulf %19, %20 : vector<8x32xf32>
    %22 = vector.broadcast %3 : vector<1x32xf32> to vector<8x32xf32>
    %23 = arith.addf %21, %22 : vector<8x32xf32>
    %c0_10 = arith.constant 0 : index
    %c0_11 = arith.constant 0 : index
    %c0_12 = arith.constant 0 : index
    %24 = vector.load %arg2[%c0_10, %c0_11, %c0_12] : memref<1x1x8xf32, #tpu.memory_space<vmem>>, vector<1x1x8xf32>
    %25 = vector.shape_cast %24 : vector<1x1x8xf32> to vector<1x8xf32>
    %c0_13 = arith.constant 0 : index
    %c0_14 = arith.constant 0 : index
    %c0_15 = arith.constant 0 : index
    %26 = vector.load %arg5[%c0_13, %c0_14, %c0_15] : memref<2x32x96xf32, #tpu.memory_space<vmem>>, vector<1x32x96xf32>
    %27 = vector.shape_cast %26 : vector<1x32x96xf32> to vector<32x96xf32>
    %28 = arith.truncf %23 : vector<8x32xf32> to vector<8x32xbf16>
    %29 = arith.truncf %27 : vector<32x96xf32> to vector<32x96xbf16>
    %cst_16 = arith.constant dense<0.000000e+00> : vector<8x96xf32>
    %30 = tpu.matmul %28, %29, %cst_16 {dimension_numbers = #tpu.dot_dimension_numbers<[1], [0], [0], [1], [0, 0, 1, 1], [], []>} : vector<8x32xbf16>, vector<32x96xbf16>, vector<8x96xf32> -> vector<8x96xf32>
    %c0_17 = arith.constant 0 : index
    %c0_18 = arith.constant 0 : index
    %c0_19 = arith.constant 0 : index
    %31 = vector.load %arg6[%c0_17, %c0_18, %c0_19] : memref<2x1x96xf32, #tpu.memory_space<vmem>>, vector<1x1x96xf32>
    %32 = vector.shape_cast %31 : vector<1x1x96xf32> to vector<1x96xf32>
    %33 = vector.broadcast %32 : vector<1x96xf32> to vector<8x96xf32>
    %34 = arith.addf %30, %33 : vector<8x96xf32>
    %35 = vector.extract_strided_slice %34 {offsets = [0, 0], sizes = [8, 8], strides = [1, 1]} : vector<8x96xf32> to vector<8x8xf32>
    %36 = vector.extract_strided_slice %34 {offsets = [0, 32], sizes = [8, 8], strides = [1, 1]} : vector<8x96xf32> to vector<8x8xf32>
    %37 = vector.extract_strided_slice %34 {offsets = [0, 64], sizes = [8, 8], strides = [1, 1]} : vector<8x96xf32> to vector<8x8xf32>
    %38 = arith.truncf %35 : vector<8x8xf32> to vector<8x8xbf16>
    %39 = arith.truncf %36 : vector<8x8xf32> to vector<8x8xbf16>
    %cst_20 = arith.constant dense<0.000000e+00> : vector<8x8xf32>
    %40 = tpu.matmul %38, %39, %cst_20 {dimension_numbers = #tpu.dot_dimension_numbers<[1], [1], [0], [0], [0, 0, 1, 0], [], []>} : vector<8x8xbf16>, vector<8x8xbf16>, vector<8x8xf32> -> vector<8x8xf32>
    %cst_21 = arith.constant 0.353553385 : f32
    %41 = vector.broadcast %cst_21 : f32 to vector<8x8xf32>
    %42 = arith.mulf %40, %41 : vector<8x8xf32>
    %43 = vector.broadcast %25 : vector<1x8xf32> to vector<8x8xf32>
    %44 = arith.addf %42, %43 : vector<8x8xf32>
    %cst_22 = arith.constant dense<0xFF800000> : vector<8xf32>
    %45 = vector.multi_reduction <maximumf>, %44, %cst_22 [1] : vector<8x8xf32> to vector<8xf32>
    %46 = vector.shape_cast %45 : vector<8xf32> to vector<8x1xf32>
    %47 = vector.broadcast %46 : vector<8x1xf32> to vector<8x8xf32>
    %48 = arith.subf %44, %47 : vector<8x8xf32>
    %49 = math.exp %48 : vector<8x8xf32>
    %cst_23 = arith.constant dense<0.000000e+00> : vector<8xf32>
    %50 = vector.multi_reduction <add>, %49, %cst_23 [1] : vector<8x8xf32> to vector<8xf32>
    %51 = vector.shape_cast %50 : vector<8xf32> to vector<8x1xf32>
    %52 = tpu.reciprocal %51 {approx = true} : vector<8x1xf32> -> vector<8x1xf32>
    %53 = vector.broadcast %52 : vector<8x1xf32> to vector<8x8xf32>
    %54 = arith.mulf %49, %53 : vector<8x8xf32>
    %55 = arith.truncf %54 : vector<8x8xf32> to vector<8x8xbf16>
    %56 = arith.truncf %37 : vector<8x8xf32> to vector<8x8xbf16>
    %cst_24 = arith.constant dense<0.000000e+00> : vector<8x8xf32>
    %57 = tpu.matmul %55, %56, %cst_24 {dimension_numbers = #tpu.dot_dimension_numbers<[1], [0], [0], [1], [0, 0, 1, 1], [], []>} : vector<8x8xbf16>, vector<8x8xbf16>, vector<8x8xf32> -> vector<8x8xf32>
    %58 = vector.extract_strided_slice %34 {offsets = [0, 8], sizes = [8, 8], strides = [1, 1]} : vector<8x96xf32> to vector<8x8xf32>
    %59 = vector.extract_strided_slice %34 {offsets = [0, 40], sizes = [8, 8], strides = [1, 1]} : vector<8x96xf32> to vector<8x8xf32>
    %60 = vector.extract_strided_slice %34 {offsets = [0, 72], sizes = [8, 8], strides = [1, 1]} : vector<8x96xf32> to vector<8x8xf32>
    %61 = arith.truncf %58 : vector<8x8xf32> to vector<8x8xbf16>
    %62 = arith.truncf %59 : vector<8x8xf32> to vector<8x8xbf16>
    %cst_25 = arith.constant dense<0.000000e+00> : vector<8x8xf32>
    %63 = tpu.matmul %61, %62, %cst_25 {dimension_numbers = #tpu.dot_dimension_numbers<[1], [1], [0], [0], [0, 0, 1, 0], [], []>} : vector<8x8xbf16>, vector<8x8xbf16>, vector<8x8xf32> -> vector<8x8xf32>
    %cst_26 = arith.constant 0.353553385 : f32
    %64 = vector.broadcast %cst_26 : f32 to vector<8x8xf32>
    %65 = arith.mulf %63, %64 : vector<8x8xf32>
    %66 = vector.broadcast %25 : vector<1x8xf32> to vector<8x8xf32>
    %67 = arith.addf %65, %66 : vector<8x8xf32>
    %cst_27 = arith.constant dense<0xFF800000> : vector<8xf32>
    %68 = vector.multi_reduction <maximumf>, %67, %cst_27 [1] : vector<8x8xf32> to vector<8xf32>
    %69 = vector.shape_cast %68 : vector<8xf32> to vector<8x1xf32>
    %70 = vector.broadcast %69 : vector<8x1xf32> to vector<8x8xf32>
    %71 = arith.subf %67, %70 : vector<8x8xf32>
    %72 = math.exp %71 : vector<8x8xf32>
    %cst_28 = arith.constant dense<0.000000e+00> : vector<8xf32>
    %73 = vector.multi_reduction <add>, %72, %cst_28 [1] : vector<8x8xf32> to vector<8xf32>
    %74 = vector.shape_cast %73 : vector<8xf32> to vector<8x1xf32>
    %75 = tpu.reciprocal %74 {approx = true} : vector<8x1xf32> -> vector<8x1xf32>
    %76 = vector.broadcast %75 : vector<8x1xf32> to vector<8x8xf32>
    %77 = arith.mulf %72, %76 : vector<8x8xf32>
    %78 = arith.truncf %77 : vector<8x8xf32> to vector<8x8xbf16>
    %79 = arith.truncf %60 : vector<8x8xf32> to vector<8x8xbf16>
    %cst_29 = arith.constant dense<0.000000e+00> : vector<8x8xf32>
    %80 = tpu.matmul %78, %79, %cst_29 {dimension_numbers = #tpu.dot_dimension_numbers<[1], [0], [0], [1], [0, 0, 1, 1], [], []>} : vector<8x8xbf16>, vector<8x8xbf16>, vector<8x8xf32> -> vector<8x8xf32>
    %81 = vector.extract_strided_slice %34 {offsets = [0, 16], sizes = [8, 8], strides = [1, 1]} : vector<8x96xf32> to vector<8x8xf32>
    %82 = vector.extract_strided_slice %34 {offsets = [0, 48], sizes = [8, 8], strides = [1, 1]} : vector<8x96xf32> to vector<8x8xf32>
    %83 = vector.extract_strided_slice %34 {offsets = [0, 80], sizes = [8, 8], strides = [1, 1]} : vector<8x96xf32> to vector<8x8xf32>
    %84 = arith.truncf %81 : vector<8x8xf32> to vector<8x8xbf16>
    %85 = arith.truncf %82 : vector<8x8xf32> to vector<8x8xbf16>
    %cst_30 = arith.constant dense<0.000000e+00> : vector<8x8xf32>
    %86 = tpu.matmul %84, %85, %cst_30 {dimension_numbers = #tpu.dot_dimension_numbers<[1], [1], [0], [0], [0, 0, 1, 0], [], []>} : vector<8x8xbf16>, vector<8x8xbf16>, vector<8x8xf32> -> vector<8x8xf32>
    %cst_31 = arith.constant 0.353553385 : f32
    %87 = vector.broadcast %cst_31 : f32 to vector<8x8xf32>
    %88 = arith.mulf %86, %87 : vector<8x8xf32>
    %89 = vector.broadcast %25 : vector<1x8xf32> to vector<8x8xf32>
    %90 = arith.addf %88, %89 : vector<8x8xf32>
    %cst_32 = arith.constant dense<0xFF800000> : vector<8xf32>
    %91 = vector.multi_reduction <maximumf>, %90, %cst_32 [1] : vector<8x8xf32> to vector<8xf32>
    %92 = vector.shape_cast %91 : vector<8xf32> to vector<8x1xf32>
    %93 = vector.broadcast %92 : vector<8x1xf32> to vector<8x8xf32>
    %94 = arith.subf %90, %93 : vector<8x8xf32>
    %95 = math.exp %94 : vector<8x8xf32>
    %cst_33 = arith.constant dense<0.000000e+00> : vector<8xf32>
    %96 = vector.multi_reduction <add>, %95, %cst_33 [1] : vector<8x8xf32> to vector<8xf32>
    %97 = vector.shape_cast %96 : vector<8xf32> to vector<8x1xf32>
    %98 = tpu.reciprocal %97 {approx = true} : vector<8x1xf32> -> vector<8x1xf32>
    %99 = vector.broadcast %98 : vector<8x1xf32> to vector<8x8xf32>
    %100 = arith.mulf %95, %99 : vector<8x8xf32>
    %101 = arith.truncf %100 : vector<8x8xf32> to vector<8x8xbf16>
    %102 = arith.truncf %83 : vector<8x8xf32> to vector<8x8xbf16>
    %cst_34 = arith.constant dense<0.000000e+00> : vector<8x8xf32>
    %103 = tpu.matmul %101, %102, %cst_34 {dimension_numbers = #tpu.dot_dimension_numbers<[1], [0], [0], [1], [0, 0, 1, 1], [], []>} : vector<8x8xbf16>, vector<8x8xbf16>, vector<8x8xf32> -> vector<8x8xf32>
    %104 = vector.extract_strided_slice %34 {offsets = [0, 24], sizes = [8, 8], strides = [1, 1]} : vector<8x96xf32> to vector<8x8xf32>
    %105 = vector.extract_strided_slice %34 {offsets = [0, 56], sizes = [8, 8], strides = [1, 1]} : vector<8x96xf32> to vector<8x8xf32>
    %106 = vector.extract_strided_slice %34 {offsets = [0, 88], sizes = [8, 8], strides = [1, 1]} : vector<8x96xf32> to vector<8x8xf32>
    %107 = arith.truncf %104 : vector<8x8xf32> to vector<8x8xbf16>
    %108 = arith.truncf %105 : vector<8x8xf32> to vector<8x8xbf16>
    %cst_35 = arith.constant dense<0.000000e+00> : vector<8x8xf32>
    %109 = tpu.matmul %107, %108, %cst_35 {dimension_numbers = #tpu.dot_dimension_numbers<[1], [1], [0], [0], [0, 0, 1, 0], [], []>} : vector<8x8xbf16>, vector<8x8xbf16>, vector<8x8xf32> -> vector<8x8xf32>
    %cst_36 = arith.constant 0.353553385 : f32
    %110 = vector.broadcast %cst_36 : f32 to vector<8x8xf32>
    %111 = arith.mulf %109, %110 : vector<8x8xf32>
    %112 = vector.broadcast %25 : vector<1x8xf32> to vector<8x8xf32>
    %113 = arith.addf %111, %112 : vector<8x8xf32>
    %cst_37 = arith.constant dense<0xFF800000> : vector<8xf32>
    %114 = vector.multi_reduction <maximumf>, %113, %cst_37 [1] : vector<8x8xf32> to vector<8xf32>
    %115 = vector.shape_cast %114 : vector<8xf32> to vector<8x1xf32>
    %116 = vector.broadcast %115 : vector<8x1xf32> to vector<8x8xf32>
    %117 = arith.subf %113, %116 : vector<8x8xf32>
    %118 = math.exp %117 : vector<8x8xf32>
    %cst_38 = arith.constant dense<0.000000e+00> : vector<8xf32>
    %119 = vector.multi_reduction <add>, %118, %cst_38 [1] : vector<8x8xf32> to vector<8xf32>
    %120 = vector.shape_cast %119 : vector<8xf32> to vector<8x1xf32>
    %121 = tpu.reciprocal %120 {approx = true} : vector<8x1xf32> -> vector<8x1xf32>
    %122 = vector.broadcast %121 : vector<8x1xf32> to vector<8x8xf32>
    %123 = arith.mulf %118, %122 : vector<8x8xf32>
    %124 = arith.truncf %123 : vector<8x8xf32> to vector<8x8xbf16>
    %125 = arith.truncf %106 : vector<8x8xf32> to vector<8x8xbf16>
    %cst_39 = arith.constant dense<0.000000e+00> : vector<8x8xf32>
    %126 = tpu.matmul %124, %125, %cst_39 {dimension_numbers = #tpu.dot_dimension_numbers<[1], [0], [0], [1], [0, 0, 1, 1], [], []>} : vector<8x8xbf16>, vector<8x8xbf16>, vector<8x8xf32> -> vector<8x8xf32>
    %127 = tpu.concatenate %57, %80, %103, %126 in 1 : vector<8x8xf32>, vector<8x8xf32>, vector<8x8xf32>, vector<8x8xf32> -> vector<8x32xf32>
    %c0_40 = arith.constant 0 : index
    %c0_41 = arith.constant 0 : index
    %c0_42 = arith.constant 0 : index
    %128 = vector.load %arg7[%c0_40, %c0_41, %c0_42] : memref<2x32x32xf32, #tpu.memory_space<vmem>>, vector<1x32x32xf32>
    %129 = vector.shape_cast %128 : vector<1x32x32xf32> to vector<32x32xf32>
    %130 = arith.truncf %127 : vector<8x32xf32> to vector<8x32xbf16>
    %131 = arith.truncf %129 : vector<32x32xf32> to vector<32x32xbf16>
    %cst_43 = arith.constant dense<0.000000e+00> : vector<8x32xf32>
    %132 = tpu.matmul %130, %131, %cst_43 {dimension_numbers = #tpu.dot_dimension_numbers<[1], [0], [0], [1], [0, 0, 1, 1], [], []>} : vector<8x32xbf16>, vector<32x32xbf16>, vector<8x32xf32> -> vector<8x32xf32>
    %c0_44 = arith.constant 0 : index
    %c0_45 = arith.constant 0 : index
    %c0_46 = arith.constant 0 : index
    %133 = vector.load %arg8[%c0_44, %c0_45, %c0_46] : memref<2x1x32xf32, #tpu.memory_space<vmem>>, vector<1x1x32xf32>
    %134 = vector.shape_cast %133 : vector<1x1x32xf32> to vector<1x32xf32>
    %135 = vector.broadcast %134 : vector<1x32xf32> to vector<8x32xf32>
    %136 = arith.addf %132, %135 : vector<8x32xf32>
    %137 = arith.addf %136, %23 : vector<8x32xf32>
    %c0_47 = arith.constant 0 : index
    %c0_48 = arith.constant 0 : index
    %c0_49 = arith.constant 0 : index
    %138 = vector.load %arg9[%c0_47, %c0_48, %c0_49] : memref<2x1x32xf32, #tpu.memory_space<vmem>>, vector<1x1x32xf32>
    %139 = vector.shape_cast %138 : vector<1x1x32xf32> to vector<1x32xf32>
    %c0_50 = arith.constant 0 : index
    %c0_51 = arith.constant 0 : index
    %c0_52 = arith.constant 0 : index
    %140 = vector.load %arg10[%c0_50, %c0_51, %c0_52] : memref<2x1x32xf32, #tpu.memory_space<vmem>>, vector<1x1x32xf32>
    %141 = vector.shape_cast %140 : vector<1x1x32xf32> to vector<1x32xf32>
    %cst_53 = arith.constant dense<0.000000e+00> : vector<8xf32>
    %142 = vector.multi_reduction <add>, %137, %cst_53 [1] : vector<8x32xf32> to vector<8xf32>
    %143 = vector.shape_cast %142 : vector<8xf32> to vector<8x1xf32>
    %cst_54 = arith.constant 3.200000e+01 : f32
    %144 = vector.broadcast %cst_54 : f32 to vector<8x1xf32>
    %145 = arith.divf %143, %144 : vector<8x1xf32>
    %146 = vector.broadcast %145 : vector<8x1xf32> to vector<8x32xf32>
    %147 = arith.subf %137, %146 : vector<8x32xf32>
    %148 = arith.mulf %147, %147 : vector<8x32xf32>
    %cst_55 = arith.constant dense<0.000000e+00> : vector<8xf32>
    %149 = vector.multi_reduction <add>, %148, %cst_55 [1] : vector<8x32xf32> to vector<8xf32>
    %150 = vector.shape_cast %149 : vector<8xf32> to vector<8x1xf32>
    %cst_56 = arith.constant 3.200000e+01 : f32
    %151 = vector.broadcast %cst_56 : f32 to vector<8x1xf32>
    %152 = arith.divf %150, %151 : vector<8x1xf32>
    %cst_57 = arith.constant 9.99999996E-13 : f32
    %153 = vector.broadcast %cst_57 : f32 to vector<8x1xf32>
    %154 = arith.addf %152, %153 : vector<8x1xf32>
    %155 = math.rsqrt %154 : vector<8x1xf32>
    %156 = vector.broadcast %155 : vector<8x1xf32> to vector<8x32xf32>
    %157 = arith.mulf %147, %156 : vector<8x32xf32>
    %158 = vector.broadcast %139 : vector<1x32xf32> to vector<8x32xf32>
    %159 = arith.mulf %157, %158 : vector<8x32xf32>
    %160 = vector.broadcast %141 : vector<1x32xf32> to vector<8x32xf32>
    %161 = arith.addf %159, %160 : vector<8x32xf32>
    %c0_58 = arith.constant 0 : index
    %c0_59 = arith.constant 0 : index
    %c0_60 = arith.constant 0 : index
    %162 = vector.load %arg11[%c0_58, %c0_59, %c0_60] : memref<2x32x64xf32, #tpu.memory_space<vmem>>, vector<1x32x64xf32>
    %163 = vector.shape_cast %162 : vector<1x32x64xf32> to vector<32x64xf32>
    %164 = arith.truncf %161 : vector<8x32xf32> to vector<8x32xbf16>
    %165 = arith.truncf %163 : vector<32x64xf32> to vector<32x64xbf16>
    %cst_61 = arith.constant dense<0.000000e+00> : vector<8x64xf32>
    %166 = tpu.matmul %164, %165, %cst_61 {dimension_numbers = #tpu.dot_dimension_numbers<[1], [0], [0], [1], [0, 0, 1, 1], [], []>} : vector<8x32xbf16>, vector<32x64xbf16>, vector<8x64xf32> -> vector<8x64xf32>
    %c0_62 = arith.constant 0 : index
    %c0_63 = arith.constant 0 : index
    %c0_64 = arith.constant 0 : index
    %167 = vector.load %arg12[%c0_62, %c0_63, %c0_64] : memref<2x1x64xf32, #tpu.memory_space<vmem>>, vector<1x1x64xf32>
    %168 = vector.shape_cast %167 : vector<1x1x64xf32> to vector<1x64xf32>
    %169 = vector.broadcast %168 : vector<1x64xf32> to vector<8x64xf32>
    %170 = arith.addf %166, %169 : vector<8x64xf32>
    %cst_65 = arith.constant 5.000000e-01 : f32
    %171 = vector.broadcast %cst_65 : f32 to vector<8x64xf32>
    %172 = arith.mulf %171, %170 : vector<8x64xf32>
    %cst_66 = arith.constant 4.471500e-02 : f32
    %173 = vector.broadcast %cst_66 : f32 to vector<8x64xf32>
    %174 = arith.mulf %173, %170 : vector<8x64xf32>
    %175 = arith.mulf %174, %170 : vector<8x64xf32>
    %176 = arith.mulf %175, %170 : vector<8x64xf32>
    %177 = arith.addf %170, %176 : vector<8x64xf32>
    %cst_67 = arith.constant 0.797884583 : f32
    %178 = vector.broadcast %cst_67 : f32 to vector<8x64xf32>
    %179 = arith.mulf %178, %177 : vector<8x64xf32>
    %180 = math.tanh %179 : vector<8x64xf32>
    %cst_68 = arith.constant 1.000000e+00 : f32
    %181 = vector.broadcast %cst_68 : f32 to vector<8x64xf32>
    %182 = arith.addf %181, %180 : vector<8x64xf32>
    %183 = arith.mulf %172, %182 : vector<8x64xf32>
    %c0_69 = arith.constant 0 : index
    %c0_70 = arith.constant 0 : index
    %c0_71 = arith.constant 0 : index
    %184 = vector.load %arg13[%c0_69, %c0_70, %c0_71] : memref<2x64x32xf32, #tpu.memory_space<vmem>>, vector<1x64x32xf32>
    %185 = vector.shape_cast %184 : vector<1x64x32xf32> to vector<64x32xf32>
    %186 = arith.truncf %183 : vector<8x64xf32> to vector<8x64xbf16>
    %187 = arith.truncf %185 : vector<64x32xf32> to vector<64x32xbf16>
    %cst_72 = arith.constant dense<0.000000e+00> : vector<8x32xf32>
    %188 = tpu.matmul %186, %187, %cst_72 {dimension_numbers = #tpu.dot_dimension_numbers<[1], [0], [0], [1], [0, 0, 1, 1], [], []>} : vector<8x64xbf16>, vector<64x32xbf16>, vector<8x32xf32> -> vector<8x32xf32>
    %c0_73 = arith.constant 0 : index
    %c0_74 = arith.constant 0 : index
    %c0_75 = arith.constant 0 : index
    %189 = vector.load %arg14[%c0_73, %c0_74, %c0_75] : memref<2x1x32xf32, #tpu.memory_space<vmem>>, vector<1x1x32xf32>
    %190 = vector.shape_cast %189 : vector<1x1x32xf32> to vector<1x32xf32>
    %191 = vector.broadcast %190 : vector<1x32xf32> to vector<8x32xf32>
    %192 = arith.addf %188, %191 : vector<8x32xf32>
    %193 = arith.addf %192, %161 : vector<8x32xf32>
    %c0_76 = arith.constant 0 : index
    %c0_77 = arith.constant 0 : index
    %c0_78 = arith.constant 0 : index
    %194 = vector.load %arg15[%c0_76, %c0_77, %c0_78] : memref<2x1x32xf32, #tpu.memory_space<vmem>>, vector<1x1x32xf32>
    %195 = vector.shape_cast %194 : vector<1x1x32xf32> to vector<1x32xf32>
    %c0_79 = arith.constant 0 : index
    %c0_80 = arith.constant 0 : index
    %c0_81 = arith.constant 0 : index
    %196 = vector.load %arg16[%c0_79, %c0_80, %c0_81] : memref<2x1x32xf32, #tpu.memory_space<vmem>>, vector<1x1x32xf32>
    %197 = vector.shape_cast %196 : vector<1x1x32xf32> to vector<1x32xf32>
    %cst_82 = arith.constant dense<0.000000e+00> : vector<8xf32>
    %198 = vector.multi_reduction <add>, %193, %cst_82 [1] : vector<8x32xf32> to vector<8xf32>
    %199 = vector.shape_cast %198 : vector<8xf32> to vector<8x1xf32>
    %cst_83 = arith.constant 3.200000e+01 : f32
    %200 = vector.broadcast %cst_83 : f32 to vector<8x1xf32>
    %201 = arith.divf %199, %200 : vector<8x1xf32>
    %202 = vector.broadcast %201 : vector<8x1xf32> to vector<8x32xf32>
    %203 = arith.subf %193, %202 : vector<8x32xf32>
    %204 = arith.mulf %203, %203 : vector<8x32xf32>
    %cst_84 = arith.constant dense<0.000000e+00> : vector<8xf32>
    %205 = vector.multi_reduction <add>, %204, %cst_84 [1] : vector<8x32xf32> to vector<8xf32>
    %206 = vector.shape_cast %205 : vector<8xf32> to vector<8x1xf32>
    %cst_85 = arith.constant 3.200000e+01 : f32
    %207 = vector.broadcast %cst_85 : f32 to vector<8x1xf32>
    %208 = arith.divf %206, %207 : vector<8x1xf32>
    %cst_86 = arith.constant 9.99999996E-13 : f32
    %209 = vector.broadcast %cst_86 : f32 to vector<8x1xf32>
    %210 = arith.addf %208, %209 : vector<8x1xf32>
    %211 = math.rsqrt %210 : vector<8x1xf32>
    %212 = vector.broadcast %211 : vector<8x1xf32> to vector<8x32xf32>
    %213 = arith.mulf %203, %212 : vector<8x32xf32>
    %214 = vector.broadcast %195 : vector<1x32xf32> to vector<8x32xf32>
    %215 = arith.mulf %213, %214 : vector<8x32xf32>
    %216 = vector.broadcast %197 : vector<1x32xf32> to vector<8x32xf32>
    %217 = arith.addf %215, %216 : vector<8x32xf32>
    %c1 = arith.constant 1 : index
    %c0_87 = arith.constant 0 : index
    %c0_88 = arith.constant 0 : index
    %218 = vector.load %arg5[%c1, %c0_87, %c0_88] : memref<2x32x96xf32, #tpu.memory_space<vmem>>, vector<1x32x96xf32>
    %219 = vector.shape_cast %218 : vector<1x32x96xf32> to vector<32x96xf32>
    %220 = arith.truncf %217 : vector<8x32xf32> to vector<8x32xbf16>
    %221 = arith.truncf %219 : vector<32x96xf32> to vector<32x96xbf16>
    %cst_89 = arith.constant dense<0.000000e+00> : vector<8x96xf32>
    %222 = tpu.matmul %220, %221, %cst_89 {dimension_numbers = #tpu.dot_dimension_numbers<[1], [0], [0], [1], [0, 0, 1, 1], [], []>} : vector<8x32xbf16>, vector<32x96xbf16>, vector<8x96xf32> -> vector<8x96xf32>
    %c1_90 = arith.constant 1 : index
    %c0_91 = arith.constant 0 : index
    %c0_92 = arith.constant 0 : index
    %223 = vector.load %arg6[%c1_90, %c0_91, %c0_92] : memref<2x1x96xf32, #tpu.memory_space<vmem>>, vector<1x1x96xf32>
    %224 = vector.shape_cast %223 : vector<1x1x96xf32> to vector<1x96xf32>
    %225 = vector.broadcast %224 : vector<1x96xf32> to vector<8x96xf32>
    %226 = arith.addf %222, %225 : vector<8x96xf32>
    %227 = vector.extract_strided_slice %226 {offsets = [0, 0], sizes = [8, 8], strides = [1, 1]} : vector<8x96xf32> to vector<8x8xf32>
    %228 = vector.extract_strided_slice %226 {offsets = [0, 32], sizes = [8, 8], strides = [1, 1]} : vector<8x96xf32> to vector<8x8xf32>
    %229 = vector.extract_strided_slice %226 {offsets = [0, 64], sizes = [8, 8], strides = [1, 1]} : vector<8x96xf32> to vector<8x8xf32>
    %230 = arith.truncf %227 : vector<8x8xf32> to vector<8x8xbf16>
    %231 = arith.truncf %228 : vector<8x8xf32> to vector<8x8xbf16>
    %cst_93 = arith.constant dense<0.000000e+00> : vector<8x8xf32>
    %232 = tpu.matmul %230, %231, %cst_93 {dimension_numbers = #tpu.dot_dimension_numbers<[1], [1], [0], [0], [0, 0, 1, 0], [], []>} : vector<8x8xbf16>, vector<8x8xbf16>, vector<8x8xf32> -> vector<8x8xf32>
    %cst_94 = arith.constant 0.353553385 : f32
    %233 = vector.broadcast %cst_94 : f32 to vector<8x8xf32>
    %234 = arith.mulf %232, %233 : vector<8x8xf32>
    %235 = vector.broadcast %25 : vector<1x8xf32> to vector<8x8xf32>
    %236 = arith.addf %234, %235 : vector<8x8xf32>
    %cst_95 = arith.constant dense<0xFF800000> : vector<8xf32>
    %237 = vector.multi_reduction <maximumf>, %236, %cst_95 [1] : vector<8x8xf32> to vector<8xf32>
    %238 = vector.shape_cast %237 : vector<8xf32> to vector<8x1xf32>
    %239 = vector.broadcast %238 : vector<8x1xf32> to vector<8x8xf32>
    %240 = arith.subf %236, %239 : vector<8x8xf32>
    %241 = math.exp %240 : vector<8x8xf32>
    %cst_96 = arith.constant dense<0.000000e+00> : vector<8xf32>
    %242 = vector.multi_reduction <add>, %241, %cst_96 [1] : vector<8x8xf32> to vector<8xf32>
    %243 = vector.shape_cast %242 : vector<8xf32> to vector<8x1xf32>
    %244 = tpu.reciprocal %243 {approx = true} : vector<8x1xf32> -> vector<8x1xf32>
    %245 = vector.broadcast %244 : vector<8x1xf32> to vector<8x8xf32>
    %246 = arith.mulf %241, %245 : vector<8x8xf32>
    %247 = arith.truncf %246 : vector<8x8xf32> to vector<8x8xbf16>
    %248 = arith.truncf %229 : vector<8x8xf32> to vector<8x8xbf16>
    %cst_97 = arith.constant dense<0.000000e+00> : vector<8x8xf32>
    %249 = tpu.matmul %247, %248, %cst_97 {dimension_numbers = #tpu.dot_dimension_numbers<[1], [0], [0], [1], [0, 0, 1, 1], [], []>} : vector<8x8xbf16>, vector<8x8xbf16>, vector<8x8xf32> -> vector<8x8xf32>
    %250 = vector.extract_strided_slice %226 {offsets = [0, 8], sizes = [8, 8], strides = [1, 1]} : vector<8x96xf32> to vector<8x8xf32>
    %251 = vector.extract_strided_slice %226 {offsets = [0, 40], sizes = [8, 8], strides = [1, 1]} : vector<8x96xf32> to vector<8x8xf32>
    %252 = vector.extract_strided_slice %226 {offsets = [0, 72], sizes = [8, 8], strides = [1, 1]} : vector<8x96xf32> to vector<8x8xf32>
    %253 = arith.truncf %250 : vector<8x8xf32> to vector<8x8xbf16>
    %254 = arith.truncf %251 : vector<8x8xf32> to vector<8x8xbf16>
    %cst_98 = arith.constant dense<0.000000e+00> : vector<8x8xf32>
    %255 = tpu.matmul %253, %254, %cst_98 {dimension_numbers = #tpu.dot_dimension_numbers<[1], [1], [0], [0], [0, 0, 1, 0], [], []>} : vector<8x8xbf16>, vector<8x8xbf16>, vector<8x8xf32> -> vector<8x8xf32>
    %cst_99 = arith.constant 0.353553385 : f32
    %256 = vector.broadcast %cst_99 : f32 to vector<8x8xf32>
    %257 = arith.mulf %255, %256 : vector<8x8xf32>
    %258 = vector.broadcast %25 : vector<1x8xf32> to vector<8x8xf32>
    %259 = arith.addf %257, %258 : vector<8x8xf32>
    %cst_100 = arith.constant dense<0xFF800000> : vector<8xf32>
    %260 = vector.multi_reduction <maximumf>, %259, %cst_100 [1] : vector<8x8xf32> to vector<8xf32>
    %261 = vector.shape_cast %260 : vector<8xf32> to vector<8x1xf32>
    %262 = vector.broadcast %261 : vector<8x1xf32> to vector<8x8xf32>
    %263 = arith.subf %259, %262 : vector<8x8xf32>
    %264 = math.exp %263 : vector<8x8xf32>
    %cst_101 = arith.constant dense<0.000000e+00> : vector<8xf32>
    %265 = vector.multi_reduction <add>, %264, %cst_101 [1] : vector<8x8xf32> to vector<8xf32>
    %266 = vector.shape_cast %265 : vector<8xf32> to vector<8x1xf32>
    %267 = tpu.reciprocal %266 {approx = true} : vector<8x1xf32> -> vector<8x1xf32>
    %268 = vector.broadcast %267 : vector<8x1xf32> to vector<8x8xf32>
    %269 = arith.mulf %264, %268 : vector<8x8xf32>
    %270 = arith.truncf %269 : vector<8x8xf32> to vector<8x8xbf16>
    %271 = arith.truncf %252 : vector<8x8xf32> to vector<8x8xbf16>
    %cst_102 = arith.constant dense<0.000000e+00> : vector<8x8xf32>
    %272 = tpu.matmul %270, %271, %cst_102 {dimension_numbers = #tpu.dot_dimension_numbers<[1], [0], [0], [1], [0, 0, 1, 1], [], []>} : vector<8x8xbf16>, vector<8x8xbf16>, vector<8x8xf32> -> vector<8x8xf32>
    %273 = vector.extract_strided_slice %226 {offsets = [0, 16], sizes = [8, 8], strides = [1, 1]} : vector<8x96xf32> to vector<8x8xf32>
    %274 = vector.extract_strided_slice %226 {offsets = [0, 48], sizes = [8, 8], strides = [1, 1]} : vector<8x96xf32> to vector<8x8xf32>
    %275 = vector.extract_strided_slice %226 {offsets = [0, 80], sizes = [8, 8], strides = [1, 1]} : vector<8x96xf32> to vector<8x8xf32>
    %276 = arith.truncf %273 : vector<8x8xf32> to vector<8x8xbf16>
    %277 = arith.truncf %274 : vector<8x8xf32> to vector<8x8xbf16>
    %cst_103 = arith.constant dense<0.000000e+00> : vector<8x8xf32>
    %278 = tpu.matmul %276, %277, %cst_103 {dimension_numbers = #tpu.dot_dimension_numbers<[1], [1], [0], [0], [0, 0, 1, 0], [], []>} : vector<8x8xbf16>, vector<8x8xbf16>, vector<8x8xf32> -> vector<8x8xf32>
    %cst_104 = arith.constant 0.353553385 : f32
    %279 = vector.broadcast %cst_104 : f32 to vector<8x8xf32>
    %280 = arith.mulf %278, %279 : vector<8x8xf32>
    %281 = vector.broadcast %25 : vector<1x8xf32> to vector<8x8xf32>
    %282 = arith.addf %280, %281 : vector<8x8xf32>
    %cst_105 = arith.constant dense<0xFF800000> : vector<8xf32>
    %283 = vector.multi_reduction <maximumf>, %282, %cst_105 [1] : vector<8x8xf32> to vector<8xf32>
    %284 = vector.shape_cast %283 : vector<8xf32> to vector<8x1xf32>
    %285 = vector.broadcast %284 : vector<8x1xf32> to vector<8x8xf32>
    %286 = arith.subf %282, %285 : vector<8x8xf32>
    %287 = math.exp %286 : vector<8x8xf32>
    %cst_106 = arith.constant dense<0.000000e+00> : vector<8xf32>
    %288 = vector.multi_reduction <add>, %287, %cst_106 [1] : vector<8x8xf32> to vector<8xf32>
    %289 = vector.shape_cast %288 : vector<8xf32> to vector<8x1xf32>
    %290 = tpu.reciprocal %289 {approx = true} : vector<8x1xf32> -> vector<8x1xf32>
    %291 = vector.broadcast %290 : vector<8x1xf32> to vector<8x8xf32>
    %292 = arith.mulf %287, %291 : vector<8x8xf32>
    %293 = arith.truncf %292 : vector<8x8xf32> to vector<8x8xbf16>
    %294 = arith.truncf %275 : vector<8x8xf32> to vector<8x8xbf16>
    %cst_107 = arith.constant dense<0.000000e+00> : vector<8x8xf32>
    %295 = tpu.matmul %293, %294, %cst_107 {dimension_numbers = #tpu.dot_dimension_numbers<[1], [0], [0], [1], [0, 0, 1, 1], [], []>} : vector<8x8xbf16>, vector<8x8xbf16>, vector<8x8xf32> -> vector<8x8xf32>
    %296 = vector.extract_strided_slice %226 {offsets = [0, 24], sizes = [8, 8], strides = [1, 1]} : vector<8x96xf32> to vector<8x8xf32>
    %297 = vector.extract_strided_slice %226 {offsets = [0, 56], sizes = [8, 8], strides = [1, 1]} : vector<8x96xf32> to vector<8x8xf32>
    %298 = vector.extract_strided_slice %226 {offsets = [0, 88], sizes = [8, 8], strides = [1, 1]} : vector<8x96xf32> to vector<8x8xf32>
    %299 = arith.truncf %296 : vector<8x8xf32> to vector<8x8xbf16>
    %300 = arith.truncf %297 : vector<8x8xf32> to vector<8x8xbf16>
    %cst_108 = arith.constant dense<0.000000e+00> : vector<8x8xf32>
    %301 = tpu.matmul %299, %300, %cst_108 {dimension_numbers = #tpu.dot_dimension_numbers<[1], [1], [0], [0], [0, 0, 1, 0], [], []>} : vector<8x8xbf16>, vector<8x8xbf16>, vector<8x8xf32> -> vector<8x8xf32>
    %cst_109 = arith.constant 0.353553385 : f32
    %302 = vector.broadcast %cst_109 : f32 to vector<8x8xf32>
    %303 = arith.mulf %301, %302 : vector<8x8xf32>
    %304 = vector.broadcast %25 : vector<1x8xf32> to vector<8x8xf32>
    %305 = arith.addf %303, %304 : vector<8x8xf32>
    %cst_110 = arith.constant dense<0xFF800000> : vector<8xf32>
    %306 = vector.multi_reduction <maximumf>, %305, %cst_110 [1] : vector<8x8xf32> to vector<8xf32>
    %307 = vector.shape_cast %306 : vector<8xf32> to vector<8x1xf32>
    %308 = vector.broadcast %307 : vector<8x1xf32> to vector<8x8xf32>
    %309 = arith.subf %305, %308 : vector<8x8xf32>
    %310 = math.exp %309 : vector<8x8xf32>
    %cst_111 = arith.constant dense<0.000000e+00> : vector<8xf32>
    %311 = vector.multi_reduction <add>, %310, %cst_111 [1] : vector<8x8xf32> to vector<8xf32>
    %312 = vector.shape_cast %311 : vector<8xf32> to vector<8x1xf32>
    %313 = tpu.reciprocal %312 {approx = true} : vector<8x1xf32> -> vector<8x1xf32>
    %314 = vector.broadcast %313 : vector<8x1xf32> to vector<8x8xf32>
    %315 = arith.mulf %310, %314 : vector<8x8xf32>
    %316 = arith.truncf %315 : vector<8x8xf32> to vector<8x8xbf16>
    %317 = arith.truncf %298 : vector<8x8xf32> to vector<8x8xbf16>
    %cst_112 = arith.constant dense<0.000000e+00> : vector<8x8xf32>
    %318 = tpu.matmul %316, %317, %cst_112 {dimension_numbers = #tpu.dot_dimension_numbers<[1], [0], [0], [1], [0, 0, 1, 1], [], []>} : vector<8x8xbf16>, vector<8x8xbf16>, vector<8x8xf32> -> vector<8x8xf32>
    %319 = tpu.concatenate %249, %272, %295, %318 in 1 : vector<8x8xf32>, vector<8x8xf32>, vector<8x8xf32>, vector<8x8xf32> -> vector<8x32xf32>
    %c1_113 = arith.constant 1 : index
    %c0_114 = arith.constant 0 : index
    %c0_115 = arith.constant 0 : index
    %320 = vector.load %arg7[%c1_113, %c0_114, %c0_115] : memref<2x32x32xf32, #tpu.memory_space<vmem>>, vector<1x32x32xf32>
    %321 = vector.shape_cast %320 : vector<1x32x32xf32> to vector<32x32xf32>
    %322 = arith.truncf %319 : vector<8x32xf32> to vector<8x32xbf16>
    %323 = arith.truncf %321 : vector<32x32xf32> to vector<32x32xbf16>
    %cst_116 = arith.constant dense<0.000000e+00> : vector<8x32xf32>
    %324 = tpu.matmul %322, %323, %cst_116 {dimension_numbers = #tpu.dot_dimension_numbers<[1], [0], [0], [1], [0, 0, 1, 1], [], []>} : vector<8x32xbf16>, vector<32x32xbf16>, vector<8x32xf32> -> vector<8x32xf32>
    %c1_117 = arith.constant 1 : index
    %c0_118 = arith.constant 0 : index
    %c0_119 = arith.constant 0 : index
    %325 = vector.load %arg8[%c1_117, %c0_118, %c0_119] : memref<2x1x32xf32, #tpu.memory_space<vmem>>, vector<1x1x32xf32>
    %326 = vector.shape_cast %325 : vector<1x1x32xf32> to vector<1x32xf32>
    %327 = vector.broadcast %326 : vector<1x32xf32> to vector<8x32xf32>
    %328 = arith.addf %324, %327 : vector<8x32xf32>
    %329 = arith.addf %328, %217 : vector<8x32xf32>
    %c1_120 = arith.constant 1 : index
    %c0_121 = arith.constant 0 : index
    %c0_122 = arith.constant 0 : index
    %330 = vector.load %arg9[%c1_120, %c0_121, %c0_122] : memref<2x1x32xf32, #tpu.memory_space<vmem>>, vector<1x1x32xf32>
    %331 = vector.shape_cast %330 : vector<1x1x32xf32> to vector<1x32xf32>
    %c1_123 = arith.constant 1 : index
    %c0_124 = arith.constant 0 : index
    %c0_125 = arith.constant 0 : index
    %332 = vector.load %arg10[%c1_123, %c0_124, %c0_125] : memref<2x1x32xf32, #tpu.memory_space<vmem>>, vector<1x1x32xf32>
    %333 = vector.shape_cast %332 : vector<1x1x32xf32> to vector<1x32xf32>
    %cst_126 = arith.constant dense<0.000000e+00> : vector<8xf32>
    %334 = vector.multi_reduction <add>, %329, %cst_126 [1] : vector<8x32xf32> to vector<8xf32>
    %335 = vector.shape_cast %334 : vector<8xf32> to vector<8x1xf32>
    %cst_127 = arith.constant 3.200000e+01 : f32
    %336 = vector.broadcast %cst_127 : f32 to vector<8x1xf32>
    %337 = arith.divf %335, %336 : vector<8x1xf32>
    %338 = vector.broadcast %337 : vector<8x1xf32> to vector<8x32xf32>
    %339 = arith.subf %329, %338 : vector<8x32xf32>
    %340 = arith.mulf %339, %339 : vector<8x32xf32>
    %cst_128 = arith.constant dense<0.000000e+00> : vector<8xf32>
    %341 = vector.multi_reduction <add>, %340, %cst_128 [1] : vector<8x32xf32> to vector<8xf32>
    %342 = vector.shape_cast %341 : vector<8xf32> to vector<8x1xf32>
    %cst_129 = arith.constant 3.200000e+01 : f32
    %343 = vector.broadcast %cst_129 : f32 to vector<8x1xf32>
    %344 = arith.divf %342, %343 : vector<8x1xf32>
    %cst_130 = arith.constant 9.99999996E-13 : f32
    %345 = vector.broadcast %cst_130 : f32 to vector<8x1xf32>
    %346 = arith.addf %344, %345 : vector<8x1xf32>
    %347 = math.rsqrt %346 : vector<8x1xf32>
    %348 = vector.broadcast %347 : vector<8x1xf32> to vector<8x32xf32>
    %349 = arith.mulf %339, %348 : vector<8x32xf32>
    %350 = vector.broadcast %331 : vector<1x32xf32> to vector<8x32xf32>
    %351 = arith.mulf %349, %350 : vector<8x32xf32>
    %352 = vector.broadcast %333 : vector<1x32xf32> to vector<8x32xf32>
    %353 = arith.addf %351, %352 : vector<8x32xf32>
    %c1_131 = arith.constant 1 : index
    %c0_132 = arith.constant 0 : index
    %c0_133 = arith.constant 0 : index
    %354 = vector.load %arg11[%c1_131, %c0_132, %c0_133] : memref<2x32x64xf32, #tpu.memory_space<vmem>>, vector<1x32x64xf32>
    %355 = vector.shape_cast %354 : vector<1x32x64xf32> to vector<32x64xf32>
    %356 = arith.truncf %353 : vector<8x32xf32> to vector<8x32xbf16>
    %357 = arith.truncf %355 : vector<32x64xf32> to vector<32x64xbf16>
    %cst_134 = arith.constant dense<0.000000e+00> : vector<8x64xf32>
    %358 = tpu.matmul %356, %357, %cst_134 {dimension_numbers = #tpu.dot_dimension_numbers<[1], [0], [0], [1], [0, 0, 1, 1], [], []>} : vector<8x32xbf16>, vector<32x64xbf16>, vector<8x64xf32> -> vector<8x64xf32>
    %c1_135 = arith.constant 1 : index
    %c0_136 = arith.constant 0 : index
    %c0_137 = arith.constant 0 : index
    %359 = vector.load %arg12[%c1_135, %c0_136, %c0_137] : memref<2x1x64xf32, #tpu.memory_space<vmem>>, vector<1x1x64xf32>
    %360 = vector.shape_cast %359 : vector<1x1x64xf32> to vector<1x64xf32>
    %361 = vector.broadcast %360 : vector<1x64xf32> to vector<8x64xf32>
    %362 = arith.addf %358, %361 : vector<8x64xf32>
    %cst_138 = arith.constant 5.000000e-01 : f32
    %363 = vector.broadcast %cst_138 : f32 to vector<8x64xf32>
    %364 = arith.mulf %363, %362 : vector<8x64xf32>
    %cst_139 = arith.constant 4.471500e-02 : f32
    %365 = vector.broadcast %cst_139 : f32 to vector<8x64xf32>
    %366 = arith.mulf %365, %362 : vector<8x64xf32>
    %367 = arith.mulf %366, %362 : vector<8x64xf32>
    %368 = arith.mulf %367, %362 : vector<8x64xf32>
    %369 = arith.addf %362, %368 : vector<8x64xf32>
    %cst_140 = arith.constant 0.797884583 : f32
    %370 = vector.broadcast %cst_140 : f32 to vector<8x64xf32>
    %371 = arith.mulf %370, %369 : vector<8x64xf32>
    %372 = math.tanh %371 : vector<8x64xf32>
    %cst_141 = arith.constant 1.000000e+00 : f32
    %373 = vector.broadcast %cst_141 : f32 to vector<8x64xf32>
    %374 = arith.addf %373, %372 : vector<8x64xf32>
    %375 = arith.mulf %364, %374 : vector<8x64xf32>
    %c1_142 = arith.constant 1 : index
    %c0_143 = arith.constant 0 : index
    %c0_144 = arith.constant 0 : index
    %376 = vector.load %arg13[%c1_142, %c0_143, %c0_144] : memref<2x64x32xf32, #tpu.memory_space<vmem>>, vector<1x64x32xf32>
    %377 = vector.shape_cast %376 : vector<1x64x32xf32> to vector<64x32xf32>
    %378 = arith.truncf %375 : vector<8x64xf32> to vector<8x64xbf16>
    %379 = arith.truncf %377 : vector<64x32xf32> to vector<64x32xbf16>
    %cst_145 = arith.constant dense<0.000000e+00> : vector<8x32xf32>
    %380 = tpu.matmul %378, %379, %cst_145 {dimension_numbers = #tpu.dot_dimension_numbers<[1], [0], [0], [1], [0, 0, 1, 1], [], []>} : vector<8x64xbf16>, vector<64x32xbf16>, vector<8x32xf32> -> vector<8x32xf32>
    %c1_146 = arith.constant 1 : index
    %c0_147 = arith.constant 0 : index
    %c0_148 = arith.constant 0 : index
    %381 = vector.load %arg14[%c1_146, %c0_147, %c0_148] : memref<2x1x32xf32, #tpu.memory_space<vmem>>, vector<1x1x32xf32>
    %382 = vector.shape_cast %381 : vector<1x1x32xf32> to vector<1x32xf32>
    %383 = vector.broadcast %382 : vector<1x32xf32> to vector<8x32xf32>
    %384 = arith.addf %380, %383 : vector<8x32xf32>
    %385 = arith.addf %384, %353 : vector<8x32xf32>
    %c1_149 = arith.constant 1 : index
    %c0_150 = arith.constant 0 : index
    %c0_151 = arith.constant 0 : index
    %386 = vector.load %arg15[%c1_149, %c0_150, %c0_151] : memref<2x1x32xf32, #tpu.memory_space<vmem>>, vector<1x1x32xf32>
    %387 = vector.shape_cast %386 : vector<1x1x32xf32> to vector<1x32xf32>
    %c1_152 = arith.constant 1 : index
    %c0_153 = arith.constant 0 : index
    %c0_154 = arith.constant 0 : index
    %388 = vector.load %arg16[%c1_152, %c0_153, %c0_154] : memref<2x1x32xf32, #tpu.memory_space<vmem>>, vector<1x1x32xf32>
    %389 = vector.shape_cast %388 : vector<1x1x32xf32> to vector<1x32xf32>
    %cst_155 = arith.constant dense<0.000000e+00> : vector<8xf32>
    %390 = vector.multi_reduction <add>, %385, %cst_155 [1] : vector<8x32xf32> to vector<8xf32>
    %391 = vector.shape_cast %390 : vector<8xf32> to vector<8x1xf32>
    %cst_156 = arith.constant 3.200000e+01 : f32
    %392 = vector.broadcast %cst_156 : f32 to vector<8x1xf32>
    %393 = arith.divf %391, %392 : vector<8x1xf32>
    %394 = vector.broadcast %393 : vector<8x1xf32> to vector<8x32xf32>
    %395 = arith.subf %385, %394 : vector<8x32xf32>
    %396 = arith.mulf %395, %395 : vector<8x32xf32>
    %cst_157 = arith.constant dense<0.000000e+00> : vector<8xf32>
    %397 = vector.multi_reduction <add>, %396, %cst_157 [1] : vector<8x32xf32> to vector<8xf32>
    %398 = vector.shape_cast %397 : vector<8xf32> to vector<8x1xf32>
    %cst_158 = arith.constant 3.200000e+01 : f32
    %399 = vector.broadcast %cst_158 : f32 to vector<8x1xf32>
    %400 = arith.divf %398, %399 : vector<8x1xf32>
    %cst_159 = arith.constant 9.99999996E-13 : f32
    %401 = vector.broadcast %cst_159 : f32 to vector<8x1xf32>
    %402 = arith.addf %400, %401 : vector<8x1xf32>
    %403 = math.rsqrt %402 : vector<8x1xf32>
    %404 = vector.broadcast %403 : vector<8x1xf32> to vector<8x32xf32>
    %405 = arith.mulf %395, %404 : vector<8x32xf32>
    %406 = vector.broadcast %387 : vector<1x32xf32> to vector<8x32xf32>
    %407 = arith.mulf %405, %406 : vector<8x32xf32>
    %408 = vector.broadcast %389 : vector<1x32xf32> to vector<8x32xf32>
    %409 = arith.addf %407, %408 : vector<8x32xf32>
    %c0_160 = arith.constant 0 : index
    %c0_161 = arith.constant 0 : index
    %c0_162 = arith.constant 0 : index
    %410 = vector.load %arg17[%c0_160, %c0_161, %c0_162] : memref<1x8x32xf32, #tpu.memory_space<vmem>>, vector<1x8x32xf32>
    %411 = vector.shape_cast %410 : vector<1x8x32xf32> to vector<8x32xf32>
    %412 = vector.shape_cast %409 : vector<8x32xf32> to vector<1x8x32xf32>
    tpu.vector_store %arg17[%c0_160, %c0_161, %c0_162], %412 {strides = array<i32>} : memref<1x8x32xf32, #tpu.memory_space<vmem>>, vector<1x8x32xf32>,
    return
  }
  func.func @transform_0(%arg0: i32) -> (i32, i32, i32) {
    %c0_i32 = arith.constant 0 : i32
    %c0_i32_0 = arith.constant 0 : i32
    %c0_i32_1 = arith.constant 0 : i32
    return %arg0, %c0_i32, %c0_i32_0 : i32, i32, i32
  }
  func.func @transform_1(%arg0: i32) -> (i32, i32, i32) {
    %c0_i32 = arith.constant 0 : i32
    %c0_i32_0 = arith.constant 0 : i32
    %c0_i32_1 = arith.constant 0 : i32
    return %arg0, %c0_i32, %c0_i32_0 : i32, i32, i32
  }
  func.func @transform_2(%arg0: i32) -> (i32, i32) {
    %c0_i32 = arith.constant 0 : i32
    %c0_i32_0 = arith.constant 0 : i32
    %c0_i32_1 = arith.constant 0 : i32
    return %c0_i32, %c0_i32_0 : i32, i32
  }
  func.func @transform_3(%arg0: i32) -> (i32, i32) {
    %c0_i32 = arith.constant 0 : i32
    %c0_i32_0 = arith.constant 0 : i32
    %c0_i32_1 = arith.constant 0 : i32
    return %c0_i32, %c0_i32_0 : i32, i32
  }
  func.func @transform_4(%arg0: i32) -> (i32, i32, i32) {
    %c0_i32 = arith.constant 0 : i32
    %c0_i32_0 = arith.constant 0 : i32
    %c0_i32_1 = arith.constant 0 : i32
    %c0_i32_2 = arith.constant 0 : i32
    return %c0_i32, %c0_i32_0, %c0_i32_1 : i32, i32, i32
  }
  func.func @transform_5(%arg0: i32) -> (i32, i32, i32) {
    %c0_i32 = arith.constant 0 : i32
    %c0_i32_0 = arith.constant 0 : i32
    %c0_i32_1 = arith.constant 0 : i32
    %c0_i32_2 = arith.constant 0 : i32
    return %c0_i32, %c0_i32_0, %c0_i32_1 : i32, i32, i32
  }
  func.func @transform_6(%arg0: i32) -> (i32, i32, i32) {
    %c0_i32 = arith.constant 0 : i32
    %c0_i32_0 = arith.constant 0 : i32
    %c0_i32_1 = arith.constant 0 : i32
    %c0_i32_2 = arith.constant 0 : i32
    return %c0_i32, %c0_i32_0, %c0_i32_1 : i32, i32, i32
  }
  func.func @transform_7(%arg0: i32) -> (i32, i32, i32) {
    %c0_i32 = arith.constant 0 : i32
    %c0_i32_0 = arith.constant 0 : i32
    %c0_i32_1 = arith.constant 0 : i32
    %c0_i32_2 = arith.constant 0 : i32
    return %c0_i32, %c0_i32_0, %c0_i32_1 : i32, i32, i32
  }
  func.func @transform_8(%arg0: i32) -> (i32, i32, i32) {
    %c0_i32 = arith.constant 0 : i32
    %c0_i32_0 = arith.constant 0 : i32
    %c0_i32_1 = arith.constant 0 : i32
    %c0_i32_2 = arith.constant 0 : i32
    return %c0_i32, %c0_i32_0, %c0_i32_1 : i32, i32, i32
  }
  func.func @transform_9(%arg0: i32) -> (i32, i32, i32) {
    %c0_i32 = arith.constant 0 : i32
    %c0_i32_0 = arith.constant 0 : i32
    %c0_i32_1 = arith.constant 0 : i32
    %c0_i32_2 = arith.constant 0 : i32
    return %c0_i32, %c0_i32_0, %c0_i32_1 : i32, i32, i32
  }
  func.func @transform_10(%arg0: i32) -> (i32, i32, i32) {
    %c0_i32 = arith.constant 0 : i32
    %c0_i32_0 = arith.constant 0 : i32
    %c0_i32_1 = arith.constant 0 : i32
    %c0_i32_2 = arith.constant 0 : i32
    return %c0_i32, %c0_i32_0, %c0_i32_1 : i32, i32, i32
  }
  func.func @transform_11(%arg0: i32) -> (i32, i32, i32) {
    %c0_i32 = arith.constant 0 : i32
    %c0_i32_0 = arith.constant 0 : i32
    %c0_i32_1 = arith.constant 0 : i32
    %c0_i32_2 = arith.constant 0 : i32
    return %c0_i32, %c0_i32_0, %c0_i32_1 : i32, i32, i32
  }
  func.func @transform_12(%arg0: i32) -> (i32, i32, i32) {
    %c0_i32 = arith.constant 0 : i32
    %c0_i32_0 = arith.constant 0 : i32
    %c0_i32_1 = arith.constant 0 : i32
    %c0_i32_2 = arith.constant 0 : i32
    return %c0_i32, %c0_i32_0, %c0_i32_1 : i32, i32, i32
  }
  func.func @transform_13(%arg0: i32) -> (i32, i32, i32) {
    %c0_i32 = arith.constant 0 : i32
    %c0_i32_0 = arith.constant 0 : i32
    %c0_i32_1 = arith.constant 0 : i32
    %c0_i32_2 = arith.constant 0 : i32
    return %c0_i32, %c0_i32_0, %c0_i32_1 : i32, i32, i32
  }
  func.func @transform_14(%arg0: i32) -> (i32, i32, i32) {
    %c0_i32 = arith.constant 0 : i32
    %c0_i32_0 = arith.constant 0 : i32
    %c0_i32_1 = arith.constant 0 : i32
    %c0_i32_2 = arith.constant 0 : i32
    return %c0_i32, %c0_i32_0, %c0_i32_1 : i32, i32, i32
  }
  func.func @transform_15(%arg0: i32) -> (i32, i32, i32) {
    %c0_i32 = arith.constant 0 : i32
    %c0_i32_0 = arith.constant 0 : i32
    %c0_i32_1 = arith.constant 0 : i32
    %c0_i32_2 = arith.constant 0 : i32
    return %c0_i32, %c0_i32_0, %c0_i32_1 : i32, i32, i32
  }
  func.func @transform_16(%arg0: i32) -> (i32, i32, i32) {
    %c0_i32 = arith.constant 0 : i32
    %c0_i32_0 = arith.constant 0 : i32
    %c0_i32_1 = arith.constant 0 : i32
    return %arg0, %c0_i32, %c0_i32_0 : i32, i32, i32
  }
}

</mosaic_0001>

<llo_original>
// kernel: bert_forward.1
$region0: #{bert_forward.1}
  #allocation0 [shape = 'u32[]', space=smem, size = 0x4, offset = 0x4, fixed_abs, tag = 'smem constant byte address 0x4 - core index']
  #allocation1 [shape = 'u32[72,128]{1,0:T(1,128)}', space=vmem, size = 0x9000, scoped, tag = 'internal scratch']
  %s0 = inlined_call_operand.vmem [shape: f32[2,8,32], index: 0, kind: input, shape index: {}]
  %s1 = inlined_call_operand.vmem [shape: f32[2,1,8], index: 1, kind: input, shape index: {}]
  %s2 = inlined_call_operand.vmem [shape: f32[1,32], index: 2, kind: input, shape index: {}]
  %s3 = inlined_call_operand.vmem [shape: f32[1,32], index: 3, kind: input, shape index: {}]
  %s4 = inlined_call_operand.vmem [shape: f32[2,32,96], index: 4, kind: input, shape index: {}]
  %s5 = inlined_call_operand.vmem [shape: f32[2,1,96], index: 5, kind: input, shape index: {}]
  %s6 = inlined_call_operand.vmem [shape: f32[2,32,32], index: 6, kind: input, shape index: {}]
  %s7 = inlined_call_operand.vmem [shape: f32[2,1,32], index: 7, kind: input, shape index: {}]
  %s8 = inlined_call_operand.vmem [shape: f32[2,1,32], index: 8, kind: input, shape index: {}]
  %s9 = inlined_call_operand.vmem [shape: f32[2,1,32], index: 9, kind: input, shape index: {}]
  %s10 = inlined_call_operand.vmem [shape: f32[2,32,64], index: 10, kind: input, shape index: {}]
  %s11 = inlined_call_operand.vmem [shape: f32[2,1,64], index: 11, kind: input, shape index: {}]
  %s12 = inlined_call_operand.vmem [shape: f32[2,64,32], index: 12, kind: input, shape index: {}]
  %s13 = inlined_call_operand.vmem [shape: f32[2,1,32], index: 13, kind: input, shape index: {}]
  %s14 = inlined_call_operand.vmem [shape: f32[2,1,32], index: 14, kind: input, shape index: {}]
  %s15 = inlined_call_operand.vmem [shape: f32[2,1,32], index: 15, kind: input, shape index: {}]
  %s16 = inlined_call_operand.vmem [shape: f32[2,8,32], index: 16, kind: output, shape index: {}]
  %s17 = sld [smem:[#allocation0]]
  $region97: #{bert_forward.1} parent=0
    _
  %s19 = ssub.s32 1, %s17
  %s20 = scalar_select 0, %s19, %s17
  loop: start=0, step=1, limit=4
  $region2: #{bert_forward.1} parent=0 // loop_pre_header
    _
  $region3: #{bert_forward.1} parent=0 // loop_header
    %s22 = sphi 0, %s26
    %p23 = scmp.ge.s32.totalorder %s22, 4
    %s32 = sphi 0, %s34
    %s35 = sphi 0, %s32
    %s36 = sphi 0, %s35
    %s52 = sphi 0, %s36
    %s58 = sphi 0, %s60
    %s61 = sphi 0, %s58
    %s62 = sphi 0, %s61
    %s78 = sphi 0, %s62
    %s82 = sphi 0, %s82
    %s84 = sphi 0, %s82
    %s85 = sphi 0, %s84
    %s99 = sphi 0, %s85
    %s103 = sphi 0, %s103
    %s105 = sphi 0, %s103
    %s106 = sphi 0, %s105
    %s120 = sphi 0, %s106
    %s124 = sphi 0, %s124
    %s126 = sphi 0, %s124
    %s127 = sphi 0, %s126
    %s141 = sphi 0, %s127
    %s145 = sphi 0, %s145
    %s147 = sphi 0, %s145
    %s148 = sphi 0, %s147
    %s162 = sphi 0, %s148
    %s166 = sphi 0, %s166
    %s168 = sphi 0, %s166
    %s169 = sphi 0, %s168
    %s183 = sphi 0, %s169
    %s187 = sphi 0, %s187
    %s189 = sphi 0, %s187
    %s190 = sphi 0, %s189
    %s204 = sphi 0, %s190
    %s208 = sphi 0, %s208
    %s210 = sphi 0, %s208
    %s211 = sphi 0, %s210
    %s225 = sphi 0, %s211
    %s229 = sphi 0, %s229
    %s231 = sphi 0, %s229
    %s232 = sphi 0, %s231
    %s246 = sphi 0, %s232
    %s250 = sphi 0, %s250
    %s252 = sphi 0, %s250
    %s253 = sphi 0, %s252
    %s267 = sphi 0, %s253
    %s271 = sphi 0, %s271
    %s273 = sphi 0, %s271
    %s274 = sphi 0, %s273
    %s288 = sphi 0, %s274
    %s292 = sphi 0, %s292
    %s294 = sphi 0, %s292
    %s295 = sphi 0, %s294
    %s309 = sphi 0, %s295
    %s313 = sphi 0, %s313
    %s315 = sphi 0, %s313
    %s316 = sphi 0, %s315
    %s330 = sphi 0, %s316
    %s334 = sphi 0, %s334
    %s336 = sphi 0, %s334
    %s337 = sphi 0, %s336
    %s351 = sphi 0, %s337
    %s355 = sphi 0, %s355
    %s357 = sphi 0, %s355
    %s358 = sphi 0, %s357
    %s372 = sphi 0, %s358
    %s378 = sphi 0, %s380
    %s381 = sphi 0, %s378
    %s382 = sphi 0, %s381
    %s398 = sphi 0, %s382
  $region4: #{bert_forward.1} parent=0 // loop_header_branch
    %25 = sbr.rel (%p23) target = $region8
  $region5: #{bert_forward.1} parent=0 // loop_body
    %s27 = ssub.s32 %s22, 1
    %s28 = ssub.s32 %s22, 2
    %s29 = sadd.s32 %s22, 1
    %s30 = ssub.s32 %s22, %s29
    %p31 = scmp.eq.s32.totalorder %s30, 0
    %s33 = sadd.s32 %s32, 1
    %s34 = scalar_select %p31, %s32, %s33
    %p37 = pneg %p31
    %p38 = scmp.eq.s32.totalorder %s22, 1
    %p39 = por %p37, %p38
    %p40 = scmp.ne.s32.totalorder %s32, %s35
    %p41 = scmp.eq.s32.totalorder %s22, 0
    %p42 = por %p40, %p41
    %p43 = scmp.ne.s32.totalorder %s32, %s35
    %p44 = scmp.eq.s32.totalorder %s27, 1
    %p45 = por %p43, %p44
    %p46 = scmp.ne.s32.totalorder %s35, %s36
    %p47 = scmp.eq.s32.totalorder %s27, 0
    %p48 = por %p46, %p47
    %p49 = scmp.ne.s32.totalorder %s35, %s36
    %p50 = scmp.eq.s32.totalorder %s28, 1
    %p51 = por %p49, %p50
    %p53 = scmp.ne.s32.totalorder %s36, %s52
    %p54 = scmp.eq.s32.totalorder %s28, 0
    %p55 = por %p53, %p54
    %s56 = ssub.s32 %s22, %s29
    %p57 = scmp.eq.s32.totalorder %s56, 0
    %s59 = sadd.s32 %s58, 1
    %s60 = scalar_select %p57, %s58, %s59
    %p63 = pneg %p57
    %p64 = scmp.eq.s32.totalorder %s22, 1
    %p65 = por %p63, %p64
    %p66 = scmp.ne.s32.totalorder %s58, %s61
    %p67 = scmp.eq.s32.totalorder %s22, 0
    %p68 = por %p66, %p67
    %p69 = scmp.ne.s32.totalorder %s58, %s61
    %p70 = scmp.eq.s32.totalorder %s27, 1
    %p71 = por %p69, %p70
    %p72 = scmp.ne.s32.totalorder %s61, %s62
    %p73 = scmp.eq.s32.totalorder %s27, 0
    %p74 = por %p72, %p73
    %p75 = scmp.ne.s32.totalorder %s61, %s62
    %p76 = scmp.eq.s32.totalorder %s28, 1
    %p77 = por %p75, %p76
    %p79 = scmp.ne.s32.totalorder %s62, %s78
    %p80 = scmp.eq.s32.totalorder %s28, 0
    %p81 = por %p79, %p80
    %s83 = sadd.s32 %s82, 1
    %p86 = scmp.eq.s32.totalorder %s22, 1
    %p87 = scmp.ne.s32.totalorder %s82, %s84
    %p88 = scmp.eq.s32.totalorder %s22, 0
    %p89 = por %p87, %p88
    %p90 = scmp.ne.s32.totalorder %s82, %s84
    %p91 = scmp.eq.s32.totalorder %s27, 1
    %p92 = por %p90, %p91
    %p93 = scmp.ne.s32.totalorder %s84, %s85
    %p94 = scmp.eq.s32.totalorder %s27, 0
    %p95 = por %p93, %p94
    %p96 = scmp.ne.s32.totalorder %s84, %s85
    %p97 = scmp.eq.s32.totalorder %s28, 1
    %p98 = por %p96, %p97
    %p100 = scmp.ne.s32.totalorder %s85, %s99
    %p101 = scmp.eq.s32.totalorder %s28, 0
    %p102 = por %p100, %p101
    %s104 = sadd.s32 %s103, 1
    %p107 = scmp.eq.s32.totalorder %s22, 1
    %p108 = scmp.ne.s32.totalorder %s103, %s105
    %p109 = scmp.eq.s32.totalorder %s22, 0
    %p110 = por %p108, %p109
    %p111 = scmp.ne.s32.totalorder %s103, %s105
    %p112 = scmp.eq.s32.totalorder %s27, 1
    %p113 = por %p111, %p112
    %p114 = scmp.ne.s32.totalorder %s105, %s106
    %p115 = scmp.eq.s32.totalorder %s27, 0
    %p116 = por %p114, %p115
    %p117 = scmp.ne.s32.totalorder %s105, %s106
    %p118 = scmp.eq.s32.totalorder %s28, 1
    %p119 = por %p117, %p118
    %p121 = scmp.ne.s32.totalorder %s106, %s120
    %p122 = scmp.eq.s32.totalorder %s28, 0
    %p123 = por %p121, %p122
    %s125 = sadd.s32 %s124, 1
    %p128 = scmp.eq.s32.totalorder %s22, 1
    %p129 = scmp.ne.s32.totalorder %s124, %s126
    %p130 = scmp.eq.s32.totalorder %s22, 0
    %p131 = por %p129, %p130
    %p132 = scmp.ne.s32.totalorder %s124, %s126
    %p133 = scmp.eq.s32.totalorder %s27, 1
    %p134 = por %p132, %p133
    %p135 = scmp.ne.s32.totalorder %s126, %s127
    %p136 = scmp.eq.s32.totalorder %s27, 0
    %p137 = por %p135, %p136
    %p138 = scmp.ne.s32.totalorder %s126, %s127
    %p139 = scmp.eq.s32.totalorder %s28, 1
    %p140 = por %p138, %p139
    %p142 = scmp.ne.s32.totalorder %s127, %s141
    %p143 = scmp.eq.s32.totalorder %s28, 0
    %p144 = por %p142, %p143
    %s146 = sadd.s32 %s145, 1
    %p149 = scmp.eq.s32.totalorder %s22, 1
    %p150 = scmp.ne.s32.totalorder %s145, %s147
    %p151 = scmp.eq.s32.totalorder %s22, 0
    %p152 = por %p150, %p151
    %p153 = scmp.ne.s32.totalorder %s145, %s147
    %p154 = scmp.eq.s32.totalorder %s27, 1
    %p155 = por %p153, %p154
    %p156 = scmp.ne.s32.totalorder %s147, %s148
    %p157 = scmp.eq.s32.totalorder %s27, 0
    %p158 = por %p156, %p157
    %p159 = scmp.ne.s32.totalorder %s147, %s148
    %p160 = scmp.eq.s32.totalorder %s28, 1
    %p161 = por %p159, %p160
    %p163 = scmp.ne.s32.totalorder %s148, %s162
    %p164 = scmp.eq.s32.totalorder %s28, 0
    %p165 = por %p163, %p164
    %s167 = sadd.s32 %s166, 1
    %p170 = scmp.eq.s32.totalorder %s22, 1
    %p171 = scmp.ne.s32.totalorder %s166, %s168
    %p172 = scmp.eq.s32.totalorder %s22, 0
    %p173 = por %p171, %p172
    %p174 = scmp.ne.s32.totalorder %s166, %s168
    %p175 = scmp.eq.s32.totalorder %s27, 1
    %p176 = por %p174, %p175
    %p177 = scmp.ne.s32.totalorder %s168, %s169
    %p178 = scmp.eq.s32.totalorder %s27, 0
    %p179 = por %p177, %p178
    %p180 = scmp.ne.s32.totalorder %s168, %s169
    %p181 = scmp.eq.s32.totalorder %s28, 1
    %p182 = por %p180, %p181
    %p184 = scmp.ne.s32.totalorder %s169, %s183
    %p185 = scmp.eq.s32.totalorder %s28, 0
    %p186 = por %p184, %p185
    %s188 = sadd.s32 %s187, 1
    %p191 = scmp.eq.s32.totalorder %s22, 1
    %p192 = scmp.ne.s32.totalorder %s187, %s189
    %p193 = scmp.eq.s32.totalorder %s22, 0
    %p194 = por %p192, %p193
    %p195 = scmp.ne.s32.totalorder %s187, %s189
    %p196 = scmp.eq.s32.totalorder %s27, 1
    %p197 = por %p195, %p196
    %p198 = scmp.ne.s32.totalorder %s189, %s190
    %p199 = scmp.eq.s32.totalorder %s27, 0
    %p200 = por %p198, %p199
    %p201 = scmp.ne.s32.totalorder %s189, %s190
    %p202 = scmp.eq.s32.totalorder %s28, 1
    %p203 = por %p201, %p202
    %p205 = scmp.ne.s32.totalorder %s190, %s204
    %p206 = scmp.eq.s32.totalorder %s28, 0
    %p207 = por %p205, %p206
    %s209 = sadd.s32 %s208, 1
    %p212 = scmp.eq.s32.totalorder %s22, 1
    %p213 = scmp.ne.s32.totalorder %s208, %s210
    %p214 = scmp.eq.s32.totalorder %s22, 0
    %p215 = por %p213, %p214
    %p216 = scmp.ne.s32.totalorder %s208, %s210
    %p217 = scmp.eq.s32.totalorder %s27, 1
    %p218 = por %p216, %p217
    %p219 = scmp.ne.s32.totalorder %s210, %s211
    %p220 = scmp.eq.s32.totalorder %s27, 0
    %p221 = por %p219, %p220
    %p222 = scmp.ne.s32.totalorder %s210, %s211
    %p223 = scmp.eq.s32.totalorder %s28, 1
    %p224 = por %p222, %p223
    %p226 = scmp.ne.s32.totalorder %s211, %s225
    %p227 = scmp.eq.s32.totalorder %s28, 0
    %p228 = por %p226, %p227
    %s230 = sadd.s32 %s229, 1
    %p233 = scmp.eq.s32.totalorder %s22, 1
    %p234 = scmp.ne.s32.totalorder %s229, %s231
    %p235 = scmp.eq.s32.totalorder %s22, 0
    %p236 = por %p234, %p235
    %p237 = scmp.ne.s32.totalorder %s229, %s231
    %p238 = scmp.eq.s32.totalorder %s27, 1
    %p239 = por %p237, %p238
    %p240 = scmp.ne.s32.totalorder %s231, %s232
    %p241 = scmp.eq.s32.totalorder %s27, 0
    %p242 = por %p240, %p241
    %p243 = scmp.ne.s32.totalorder %s231, %s232
    %p244 = scmp.eq.s32.totalorder %s28, 1
    %p245 = por %p243, %p244
    %p247 = scmp.ne.s32.totalorder %s232, %s246
    %p248 = scmp.eq.s32.totalorder %s28, 0
    %p249 = por %p247, %p248
    %s251 = sadd.s32 %s250, 1
    %p254 = scmp.eq.s32.totalorder %s22, 1
    %p255 = scmp.ne.s32.totalorder %s250, %s252
    %p256 = scmp.eq.s32.totalorder %s22, 0
    %p257 = por %p255, %p256
    %p258 = scmp.ne.s32.totalorder %s250, %s252
    %p259 = scmp.eq.s32.totalorder %s27, 1
    %p260 = por %p258, %p259
    %p261 = scmp.ne.s32.totalorder %s252, %s253
    %p262 = scmp.eq.s32.totalorder %s27, 0
    %p263 = por %p261, %p262
    %p264 = scmp.ne.s32.totalorder %s252, %s253
    %p265 = scmp.eq.s32.totalorder %s28, 1
    %p266 = por %p264, %p265
    %p268 = scmp.ne.s32.totalorder %s253, %s267
    %p269 = scmp.eq.s32.totalorder %s28, 0
    %p270 = por %p268, %p269
    %s272 = sadd.s32 %s271, 1
    %p275 = scmp.eq.s32.totalorder %s22, 1
    %p276 = scmp.ne.s32.totalorder %s271, %s273
    %p277 = scmp.eq.s32.totalorder %s22, 0
    %p278 = por %p276, %p277
    %p279 = scmp.ne.s32.totalorder %s271, %s273
    %p280 = scmp.eq.s32.totalorder %s27, 1
    %p281 = por %p279, %p280
    %p282 = scmp.ne.s32.totalorder %s273, %s274
    %p283 = scmp.eq.s32.totalorder %s27, 0
    %p284 = por %p282, %p283
    %p285 = scmp.ne.s32.totalorder %s273, %s274
    %p286 = scmp.eq.s32.totalorder %s28, 1
    %p287 = por %p285, %p286
    %p289 = scmp.ne.s32.totalorder %s274, %s288
    %p290 = scmp.eq.s32.totalorder %s28, 0
    %p291 = por %p289, %p290
    %s293 = sadd.s32 %s292, 1
    %p296 = scmp.eq.s32.totalorder %s22, 1
    %p297 = scmp.ne.s32.totalorder %s292, %s294
    %p298 = scmp.eq.s32.totalorder %s22, 0
    %p299 = por %p297, %p298
    %p300 = scmp.ne.s32.totalorder %s292, %s294
    %p301 = scmp.eq.s32.totalorder %s27, 1
    %p302 = por %p300, %p301
    %p303 = scmp.ne.s32.totalorder %s294, %s295
    %p304 = scmp.eq.s32.totalorder %s27, 0
    %p305 = por %p303, %p304
    %p306 = scmp.ne.s32.totalorder %s294, %s295
    %p307 = scmp.eq.s32.totalorder %s28, 1
    %p308 = por %p306, %p307
    %p310 = scmp.ne.s32.totalorder %s295, %s309
    %p311 = scmp.eq.s32.totalorder %s28, 0
    %p312 = por %p310, %p311
    %s314 = sadd.s32 %s313, 1
    %p317 = scmp.eq.s32.totalorder %s22, 1
    %p318 = scmp.ne.s32.totalorder %s313, %s315
    %p319 = scmp.eq.s32.totalorder %s22, 0
    %p320 = por %p318, %p319
    %p321 = scmp.ne.s32.totalorder %s313, %s315
    %p322 = scmp.eq.s32.totalorder %s27, 1
    %p323 = por %p321, %p322
    %p324 = scmp.ne.s32.totalorder %s315, %s316
    %p325 = scmp.eq.s32.totalorder %s27, 0
    %p326 = por %p324, %p325
    %p327 = scmp.ne.s32.totalorder %s315, %s316
    %p328 = scmp.eq.s32.totalorder %s28, 1
    %p329 = por %p327, %p328
    %p331 = scmp.ne.s32.totalorder %s316, %s330
    %p332 = scmp.eq.s32.totalorder %s28, 0
    %p333 = por %p331, %p332
    %s335 = sadd.s32 %s334, 1
    %p338 = scmp.eq.s32.totalorder %s22, 1
    %p339 = scmp.ne.s32.totalorder %s334, %s336
    %p340 = scmp.eq.s32.totalorder %s22, 0
    %p341 = por %p339, %p340
    %p342 = scmp.ne.s32.totalorder %s334, %s336
    %p343 = scmp.eq.s32.totalorder %s27, 1
    %p344 = por %p342, %p343
    %p345 = scmp.ne.s32.totalorder %s336, %s337
    %p346 = scmp.eq.s32.totalorder %s27, 0
    %p347 = por %p345, %p346
    %p348 = scmp.ne.s32.totalorder %s336, %s337
    %p349 = scmp.eq.s32.totalorder %s28, 1
    %p350 = por %p348, %p349
    %p352 = scmp.ne.s32.totalorder %s337, %s351
    %p353 = scmp.eq.s32.totalorder %s28, 0
    %p354 = por %p352, %p353
    %s356 = sadd.s32 %s355, 1
    %p359 = scmp.eq.s32.totalorder %s22, 1
    %p360 = scmp.ne.s32.totalorder %s355, %s357
    %p361 = scmp.eq.s32.totalorder %s22, 0
    %p362 = por %p360, %p361
    %p363 = scmp.ne.s32.totalorder %s355, %s357
    %p364 = scmp.eq.s32.totalorder %s27, 1
    %p365 = por %p363, %p364
    %p366 = scmp.ne.s32.totalorder %s357, %s358
    %p367 = scmp.eq.s32.totalorder %s27, 0
    %p368 = por %p366, %p367
    %p369 = scmp.ne.s32.totalorder %s357, %s358
    %p370 = scmp.eq.s32.totalorder %s28, 1
    %p371 = por %p369, %p370
    %p373 = scmp.ne.s32.totalorder %s358, %s372
    %p374 = scmp.eq.s32.totalorder %s28, 0
    %p375 = por %p373, %p374
    %s376 = ssub.s32 %s22, %s29
    %p377 = scmp.eq.s32.totalorder %s376, 0
    %s379 = sadd.s32 %s378, 1
    %s380 = scalar_select %p377, %s378, %s379
    %p383 = pneg %p377
    %p384 = scmp.eq.s32.totalorder %s22, 1
    %p385 = por %p383, %p384
    %p386 = scmp.ne.s32.totalorder %s378, %s381
    %p387 = scmp.eq.s32.totalorder %s22, 0
    %p388 = por %p386, %p387
    %p389 = scmp.ne.s32.totalorder %s378, %s381
    %p390 = scmp.eq.s32.totalorder %s27, 1
    %p391 = por %p389, %p390
    %p392 = scmp.ne.s32.totalorder %s381, %s382
    %p393 = scmp.eq.s32.totalorder %s27, 0
    %p394 = por %p392, %p393
    %p395 = scmp.ne.s32.totalorder %s381, %s382
    %p396 = scmp.eq.s32.totalorder %s28, 1
    %p397 = por %p395, %p396
    %p399 = scmp.ne.s32.totalorder %s382, %s398
    %p400 = scmp.eq.s32.totalorder %s28, 0
    %p401 = por %p399, %p400
    %p402 = scmp.le.s32.totalorder 1, %s22
    %p403 = scmp.lt.s32.totalorder %s22, 3
    %p404 = pnand %p402, %p403
    %p405 = pneg %p404
    // Predicated region
    $region9: #{bert_forward.1} parent=5 // pred_check
      _
    $region10: #{bert_forward.1} parent=5 // pred_check_branch
      %407 = sbr.rel (%p404) target = $region12
    $region11: #{bert_forward.1} parent=5 // pred_region
      %s408 = ssub.s32 %s22, 1
      // Predicated region
      $region13: #{bert_forward.1} parent=11 // pred_check
        %p409 = pneg %p95
      $region14: #{bert_forward.1} parent=11 // pred_check_branch
        %411 = sbr.rel (%p409) target = $region16
      $region15: #{bert_forward.1} parent=11 // pred_region
        _
      $region16: #{bert_forward.1} parent=11 // pred_fallthru
        _
      // Predicated region
      $region17: #{bert_forward.1} parent=11 // pred_check
        %p412 = pneg %p116
      $region18: #{bert_forward.1} parent=11 // pred_check_branch
        %414 = sbr.rel (%p412) target = $region20
      $region19: #{bert_forward.1} parent=11 // pred_region
        _
      $region20: #{bert_forward.1} parent=11 // pred_fallthru
        _
      // Predicated region
      $region21: #{bert_forward.1} parent=11 // pred_check
        %p415 = pneg %p137
      $region22: #{bert_forward.1} parent=11 // pred_check_branch
        %417 = sbr.rel (%p415) target = $region24
      $region23: #{bert_forward.1} parent=11 // pred_region
        _
      $region24: #{bert_forward.1} parent=11 // pred_fallthru
        _
      // Predicated region
      $region25: #{bert_forward.1} parent=11 // pred_check
        %p418 = pneg %p158
      $region26: #{bert_forward.1} parent=11 // pred_check_branch
        %420 = sbr.rel (%p418) target = $region28
      $region27: #{bert_forward.1} parent=11 // pred_region
        _
      $region28: #{bert_forward.1} parent=11 // pred_fallthru
        _
      // Predicated region
      $region29: #{bert_forward.1} parent=11 // pred_check
        %p421 = pneg %p179
      $region30: #{bert_forward.1} parent=11 // pred_check_branch
        %423 = sbr.rel (%p421) target = $region32
      $region31: #{bert_forward.1} parent=11 // pred_region
        _
      $region32: #{bert_forward.1} parent=11 // pred_fallthru
        _
      // Predicated region
      $region33: #{bert_forward.1} parent=11 // pred_check
        %p424 = pneg %p200
      $region34: #{bert_forward.1} parent=11 // pred_check_branch
        %426 = sbr.rel (%p424) target = $region36
      $region35: #{bert_forward.1} parent=11 // pred_region
        _
      $region36: #{bert_forward.1} parent=11 // pred_fallthru
        _
      // Predicated region
      $region37: #{bert_forward.1} parent=11 // pred_check
        %p427 = pneg %p221
      $region38: #{bert_forward.1} parent=11 // pred_check_branch
        %429 = sbr.rel (%p427) target = $region40
      $region39: #{bert_forward.1} parent=11 // pred_region
        _
      $region40: #{bert_forward.1} parent=11 // pred_fallthru
        _
      // Predicated region
      $region41: #{bert_forward.1} parent=11 // pred_check
        %p430 = pneg %p242
      $region42: #{bert_forward.1} parent=11 // pred_check_branch
        %432 = sbr.rel (%p430) target = $region44
      $region43: #{bert_forward.1} parent=11 // pred_region
        _
      $region44: #{bert_forward.1} parent=11 // pred_fallthru
        _
      // Predicated region
      $region45: #{bert_forward.1} parent=11 // pred_check
        %p433 = pneg %p263
      $region46: #{bert_forward.1} parent=11 // pred_check_branch
        %435 = sbr.rel (%p433) target = $region48
      $region47: #{bert_forward.1} parent=11 // pred_region
        _
      $region48: #{bert_forward.1} parent=11 // pred_fallthru
        _
      // Predicated region
      $region49: #{bert_forward.1} parent=11 // pred_check
        %p436 = pneg %p284
      $region50: #{bert_forward.1} parent=11 // pred_check_branch
        %438 = sbr.rel (%p436) target = $region52
      $region51: #{bert_forward.1} parent=11 // pred_region
        _
      $region52: #{bert_forward.1} parent=11 // pred_fallthru
        _
      // Predicated region
      $region53: #{bert_forward.1} parent=11 // pred_check
        %p439 = pneg %p305
      $region54: #{bert_forward.1} parent=11 // pred_check_branch
        %441 = sbr.rel (%p439) target = $region56
      $region55: #{bert_forward.1} parent=11 // pred_region
        _
      $region56: #{bert_forward.1} parent=11 // pred_fallthru
        _
      // Predicated region
      $region57: #{bert_forward.1} parent=11 // pred_check
        %p442 = pneg %p326
      $region58: #{bert_forward.1} parent=11 // pred_check_branch
        %444 = sbr.rel (%p442) target = $region60
      $region59: #{bert_forward.1} parent=11 // pred_region
        _
      $region60: #{bert_forward.1} parent=11 // pred_fallthru
        _
      // Predicated region
      $region61: #{bert_forward.1} parent=11 // pred_check
        %p445 = pneg %p347
      $region62: #{bert_forward.1} parent=11 // pred_check_branch
        %447 = sbr.rel (%p445) target = $region64
      $region63: #{bert_forward.1} parent=11 // pred_region
        _
      $region64: #{bert_forward.1} parent=11 // pred_fallthru
        _
      // Predicated region
      $region65: #{bert_forward.1} parent=11 // pred_check
        %p448 = pneg %p368
      $region66: #{bert_forward.1} parent=11 // pred_check_branch
        %450 = sbr.rel (%p448) target = $region68
      $region67: #{bert_forward.1} parent=11 // pred_region
        _
      $region68: #{bert_forward.1} parent=11 // pred_fallthru
        _
    $region12: #{bert_forward.1} parent=5 // pred_fallthru
      _
    %p451 = scmp.lt.s32.totalorder %s22, 2
    // Predicated region
    $region69: #{bert_forward.1} parent=5 // pred_check
      %p452 = pneg %p451
    $region70: #{bert_forward.1} parent=5 // pred_check_branch
      %454 = sbr.rel (%p452) target = $region72
    $region71: #{bert_forward.1} parent=5 // pred_region
      // Predicated region
      $region73: #{bert_forward.1} parent=71 // pred_check
        %p455 = pneg %p42
      $region74: #{bert_forward.1} parent=71 // pred_check_branch
        %457 = sbr.rel (%p455) target = $region76
      $region75: #{bert_forward.1} parent=71 // pred_region
        %p458 = scmp.lt.s32.totalorder %s22, 1
        %s459 = scalar_select %p458, %s22, 1
        %s460 = smul.addr %s459, 8
        %s461 = scalar_lea.vmem %s0, %s460
      $region76: #{bert_forward.1} parent=71 // pred_fallthru
        _
      // Predicated region
      $region77: #{bert_forward.1} parent=71 // pred_check
        %p462 = pneg %p68
      $region78: #{bert_forward.1} parent=71 // pred_check_branch
        %464 = sbr.rel (%p462) target = $region80
      $region79: #{bert_forward.1} parent=71 // pred_region
        %p465 = scmp.lt.s32.totalorder %s22, 1
        %s466 = scalar_select %p465, %s22, 1
        %s467 = scalar_lea.vmem %s1, %s466
      $region80: #{bert_forward.1} parent=71 // pred_fallthru
        _
    $region72: #{bert_forward.1} parent=5 // pred_fallthru
      _
    %p468 = scmp.le.s32.totalorder 1, %s22
    %p469 = scmp.lt.s32.totalorder %s22, 3
    %p470 = pnand %p468, %p469
    %p471 = pneg %p470
    // Predicated region
    $region81: #{bert_forward.1} parent=5 // pred_check
      _
    $region82: #{bert_forward.1} parent=5 // pred_check_branch
      %473 = sbr.rel (%p470) target = $region84
    $region83: #{bert_forward.1} parent=5 // pred_region
      %s474 = ssub.s32 %s22, 1
      %p475 = scmp.lt.s32.totalorder %s27, 1
      %s476 = scalar_select %p475, %s27, 1
      %s477 = smul.addr %s476, 8
      %s478 = scalar_lea.vmem %s0, %s477
      %p479 = pneg %p48
      %p480 = pneg %p45
      %p481 = scmp.lt.s32.totalorder %s27, 1
      %s482 = scalar_select %p481, %s27, 1
      %s483 = scalar_lea.vmem %s1, %s482
      %p484 = pneg %p74
      %p485 = pneg %p71
      %p486 = pneg %p95
      %p487 = pneg %p92
      %p488 = pneg %p116
      %p489 = pneg %p113
      %p490 = pneg %p137
      %p491 = pneg %p134
      %p492 = pneg %p158
      %p493 = pneg %p155
      %p494 = pneg %p179
      %p495 = pneg %p176
      %p496 = pneg %p200
      %p497 = pneg %p197
      %p498 = pneg %p221
      %p499 = pneg %p218
      %p500 = pneg %p242
      %p501 = pneg %p239
      %p502 = pneg %p263
      %p503 = pneg %p260
      %p504 = pneg %p284
      %p505 = pneg %p281
      %p506 = pneg %p305
      %p507 = pneg %p302
      %p508 = pneg %p326
      %p509 = pneg %p323
      %p510 = pneg %p347
      %p511 = pneg %p344
      %p512 = pneg %p368
      %p513 = pneg %p365
      %p514 = pneg %p394
      %p515 = pneg %p391
      %p516 = scmp.lt.s32.totalorder %s27, 1
      %s517 = scalar_select %p516, %s27, 1
      %s518 = smul.addr %s517, 8
      %s519 = scalar_lea.vmem %s16, %s518
      %p520 = scmp.lt.s32.totalorder %s27, 1
      %s521 = scalar_select %p520, %s27, 1
      %s522 = smul.addr %s521, 8
      %s523 = scalar_lea.vmem %s0, %s522
      %p524 = scmp.lt.s32.totalorder %s27, 1
      %s525 = scalar_select %p524, %s27, 1
      %s526 = scalar_lea.vmem %s1, %s525
      %p527 = scmp.lt.s32.totalorder %s27, 1
      %s528 = scalar_select %p527, %s27, 1
      %s529 = smul.addr %s528, 8
      %s530 = scalar_lea.vmem %s16, %s529
      %v532 = vld [vmem:[%s523] sm:$0xff]
      %v533 = vld [vmem:[%s2] sm:$0x1]
      %v534 = vld [vmem:[%s3] sm:$0x1]
      %vm535 = vcmask 261120
      %v536 = vsel %vm535, %v532, 0.0
      %537 = vadd.xlane.f32.xlu0 %v536
      %v538 = vpop.xlane.xlu0 %537
      %v539 = vrcp.pop 32.0
      %v540 = vmul.f32 32.0, %v539
      %v541 = vsub.f32 1.0, %v540
      %v542 = vmul.f32 %v539, %v541
      %v543 = vadd.f32 %v539, %v542
      %vm544 = vweird.f32 %v539
      %v545 = vsel %vm544, %v539, %v543
      %v546 = vmul.f32 %v538, %v545
      %v547 = vsub.f32 %v532, %v546
      %v548 = vmul.f32 %v547, %v547
      %v549 = vsel %vm535, %v548, 0.0
      %550 = vadd.xlane.f32.xlu0 %v549
      %v551 = vpop.xlane.xlu0 %550
      %v552 = vmul.f32 %v551, %v545
      %v553 = vadd.f32 %v552, 1e-12
      %v554 = vrsqrt.pop %v553
      %v555 = vmul.f32 %v554, %v553
      %v556 = vmul.f32 %v555, %v554
      %v557 = vmul.f32 0.5, %v556
      %v558 = vsub.f32 1.5, %v557
      %v559 = vmul.f32 %v554, %v558
      %vm560 = vweird.f32 %v553
      %vm561 = vweird.f32 %v554
      %vm562 = vmor %vm560, %vm561
      %v563 = vsel %vm562, %v554, %v559
      %v564 = vmul.f32 %v547, %v563
      %v566 = vperm.slane %v533, 0
      %v568 = vmul.f32 %v564, %v566
      %v570 = vperm.slane %v534, 0
      %v572 = vadd.f32 %v568, %v570
      %v573 = vld [vmem:[%s526] sm:$0x1]
      %v574 = vld [vmem:[%s4] sm:$0xff]
      %v575 = vld [vmem:[%s4 + $0x8] sm:$0xff]
      %v576 = vld [vmem:[%s4 + $0x10] sm:$0xff]
      %v577 = vld [vmem:[%s4 + $0x18] sm:$0xff]
      %v578 = vpack.c.bf16 %v572, %v572
      %v579 = vpack.c.bf16 %v575, %v574
      %v580 = vpack.c.bf16 %v577, %v576
      %v581 = vld [vmem:[%s5] sm:$0x1]
      %v583 = vperm.slane %v581, 0
      %v586 = vsel %vm535, %v578, 0
      %588 = vmatpush.bf16.msra.mxu0 0
      %589 = vmatpush.bf16.msra.mxu0 0
      %590 = vmatpush.bf16.msra.mxu0 0
      %591 = vmatpush.bf16.msra.mxu0 0
      %592 = vmatpush.bf16.msra.mxu0 0
      %593 = vmatpush.bf16.msra.mxu0 0
      %594 = vmatpush.bf16.msra.mxu0 %v580
      %595 = vmatpush.bf16.msra.mxu0 %v579
      %596 = vmatmul.bf16.gmra.mxu0 %v586
      %v597 = vpop.f32.mrf.mxu0
      %v598 = vadd.f32 %v583, %v597
      %v599 = vpop.f32.mrf.mxu0
      %600 = vdwg.mxu0
      %v601 = vpack.c.bf16 %v598, %v598
      %603 = vrot.lane.b32.xlu0 %v601, 96
      %v604 = vpop.permute.xlu0 %603
      %vm605 = vcmask 64512
      %v607 = vsel %vm605, %v601, 0
      %v610 = vsel %vm605, %v604, 0
      %612 = vmatpush.bf16.xpose.msra.mxu0 0
      %613 = vmatpush.bf16.xpose.msra.mxu0 0
      %614 = vmatpush.bf16.xpose.msra.mxu0 0
      %615 = vmatpush.bf16.xpose.msra.mxu0 0
      %616 = vmatpush.bf16.xpose.msra.mxu0 0
      %617 = vmatpush.bf16.xpose.msra.mxu0 0
      %618 = vmatpush.bf16.xpose.msra.mxu0 0
      %619 = vmatpush.bf16.xpose.msra.mxu0 %v610
      %620 = vmatmul.bf16.gmra.mxu0 %v607
      %v621 = vpop.f32.mrf.mxu0
      %v622 = vadd.f32 0.0, %v621
      %v623 = vpop.f32.mrf.mxu0
      %624 = vdwg.mxu0
      %v625 = vmul.f32 %v622, 0.35355338
      %v627 = vperm.slane %v573, 0
      %v629 = vadd.f32 %v625, %v627
      %v630 = vsel %vm605, %v629, -inf
      %631 = vmax.xlane.f32.xlu0 %v630
      %v632 = vpop.xlane.xlu0 %631
      %v633 = vsub.f32 %v629, %v632
      %v634 = vmul.f32 %v633, 1.442695
      %v635 = vpow.pop %v634
      %v636 = vsel %vm605, %v635, 0.0
      %637 = vadd.xlane.f32.xlu0 %v636
      %v638 = vpop.xlane.xlu0 %637
      %v639 = vrcp.pop %v638
      %v640 = vmul.f32 %v635, %v639
      %v641 = vpack.c.bf16 %v640, %v640
      %642 = vrot.lane.b32.xlu0 %v601, 64
      %v643 = vpop.permute.xlu0 %642
      %v645 = vsel %vm605, %v641, 0
      %vm647 = vcmask 1043456
      %v649 = vsel %vm647, %v643, 0
      %651 = vmatpush.bf16.msra.mxu0 0
      %652 = vmatpush.bf16.msra.mxu0 0
      %653 = vmatpush.bf16.msra.mxu0 0
      %654 = vmatpush.bf16.msra.mxu0 0
      %655 = vmatpush.bf16.msra.mxu0 0
      %656 = vmatpush.bf16.msra.mxu0 0
      %657 = vmatpush.bf16.msra.mxu0 0
      %658 = vmatpush.bf16.msra.mxu0 %v649
      %659 = vmatmul.bf16.gmra.mxu0 %v645
      %v660 = vpop.f32.mrf.mxu0
      %v661 = vadd.f32 0.0, %v660
      %v662 = vpop.f32.mrf.mxu0
      %663 = vdwg.mxu0
      %664 = vrot.lane.b32.xlu0 %v601, 120
      %v665 = vpop.permute.xlu0 %664
      %666 = vrot.lane.b32.xlu0 %v601, 88
      %v667 = vpop.permute.xlu0 %666
      %v669 = vsel %vm605, %v665, 0
      %v672 = vsel %vm605, %v667, 0
      %674 = vmatpush.bf16.xpose.msra.mxu0 0
      %675 = vmatpush.bf16.xpose.msra.mxu0 0
      %676 = vmatpush.bf16.xpose.msra.mxu0 0
      %677 = vmatpush.bf16.xpose.msra.mxu0 0
      %678 = vmatpush.bf16.xpose.msra.mxu0 0
      %679 = vmatpush.bf16.xpose.msra.mxu0 0
      %680 = vmatpush.bf16.xpose.msra.mxu0 0
      %681 = vmatpush.bf16.xpose.msra.mxu0 %v672
      %682 = vmatmul.bf16.gmra.mxu0 %v669
      %v683 = vpop.f32.mrf.mxu0
      %v684 = vadd.f32 0.0, %v683
      %v685 = vpop.f32.mrf.mxu0
      %686 = vdwg.mxu0
      %v687 = vmul.f32 %v684, 0.35355338
      %v688 = vadd.f32 %v687, %v627
      %v689 = vsel %vm605, %v688, -inf
      %690 = vmax.xlane.f32.xlu0 %v689
      %v691 = vpop.xlane.xlu0 %690
      %v692 = vsub.f32 %v688, %v691
      %v693 = vmul.f32 %v692, 1.442695
      %v694 = vpow.pop %v693
      %v695 = vsel %vm605, %v694, 0.0
      %696 = vadd.xlane.f32.xlu0 %v695
      %v697 = vpop.xlane.xlu0 %696
      %v698 = vrcp.pop %v697
      %v699 = vmul.f32 %v694, %v698
      %v700 = vpack.c.bf16 %v699, %v699
      %701 = vrot.lane.b32.xlu0 %v601, 56
      %v702 = vpop.permute.xlu0 %701
      %v704 = vsel %vm605, %v700, 0
      %v707 = vsel %vm647, %v702, 0
      %709 = vmatpush.bf16.msra.mxu0 0
      %710 = vmatpush.bf16.msra.mxu0 0
      %711 = vmatpush.bf16.msra.mxu0 0
      %712 = vmatpush.bf16.msra.mxu0 0
      %713 = vmatpush.bf16.msra.mxu0 0
      %714 = vmatpush.bf16.msra.mxu0 0
      %715 = vmatpush.bf16.msra.mxu0 0
      %716 = vmatpush.bf16.msra.mxu0 %v707
      %717 = vmatmul.bf16.gmra.mxu0 %v704
      %v718 = vpop.f32.mrf.mxu0
      %v719 = vadd.f32 0.0, %v718
      %v720 = vpop.f32.mrf.mxu0
      %721 = vdwg.mxu0
      %722 = vrot.lane.b32.xlu0 %v601, 112
      %v723 = vpop.permute.xlu0 %722
      %724 = vrot.lane.b32.xlu0 %v601, 80
      %v725 = vpop.permute.xlu0 %724
      %v727 = vsel %vm605, %v723, 0
      %v730 = vsel %vm605, %v725, 0
      %732 = vmatpush.bf16.xpose.msra.mxu0 0
      %733 = vmatpush.bf16.xpose.msra.mxu0 0
      %734 = vmatpush.bf16.xpose.msra.mxu0 0
      %735 = vmatpush.bf16.xpose.msra.mxu0 0
      %736 = vmatpush.bf16.xpose.msra.mxu0 0
      %737 = vmatpush.bf16.xpose.msra.mxu0 0
      %738 = vmatpush.bf16.xpose.msra.mxu0 0
      %739 = vmatpush.bf16.xpose.msra.mxu0 %v730
      %740 = vmatmul.bf16.gmra.mxu0 %v727
      %v741 = vpop.f32.mrf.mxu0
      %v742 = vadd.f32 0.0, %v741
      %v743 = vpop.f32.mrf.mxu0
      %744 = vdwg.mxu0
      %v745 = vmul.f32 %v742, 0.35355338
      %v746 = vadd.f32 %v745, %v627
      %v747 = vsel %vm605, %v746, -inf
      %748 = vmax.xlane.f32.xlu0 %v747
      %v749 = vpop.xlane.xlu0 %748
      %v750 = vsub.f32 %v746, %v749
      %v751 = vmul.f32 %v750, 1.442695
      %v752 = vpow.pop %v751
      %v753 = vsel %vm605, %v752, 0.0
      %754 = vadd.xlane.f32.xlu0 %v753
      %v755 = vpop.xlane.xlu0 %754
      %v756 = vrcp.pop %v755
      %v757 = vmul.f32 %v752, %v756
      %v758 = vpack.c.bf16 %v757, %v757
      %759 = vrot.lane.b32.xlu0 %v601, 48
      %v760 = vpop.permute.xlu0 %759
      %v762 = vsel %vm605, %v758, 0
      %v765 = vsel %vm647, %v760, 0
      %767 = vmatpush.bf16.msra.mxu0 0
      %768 = vmatpush.bf16.msra.mxu0 0
      %769 = vmatpush.bf16.msra.mxu0 0
      %770 = vmatpush.bf16.msra.mxu0 0
      %771 = vmatpush.bf16.msra.mxu0 0
      %772 = vmatpush.bf16.msra.mxu0 0
      %773 = vmatpush.bf16.msra.mxu0 0
      %774 = vmatpush.bf16.msra.mxu0 %v765
      %775 = vmatmul.bf16.gmra.mxu0 %v762
      %v776 = vpop.f32.mrf.mxu0
      %v777 = vadd.f32 0.0, %v776
      %v778 = vpop.f32.mrf.mxu0
      %779 = vdwg.mxu0
      %780 = vrot.lane.b32.xlu0 %v601, 104
      %v781 = vpop.permute.xlu0 %780
      %782 = vrot.lane.b32.xlu0 %v601, 72
      %v783 = vpop.permute.xlu0 %782
      %v785 = vsel %vm605, %v781, 0
      %v788 = vsel %vm605, %v783, 0
      %790 = vmatpush.bf16.xpose.msra.mxu0 0
      %791 = vmatpush.bf16.xpose.msra.mxu0 0
      %792 = vmatpush.bf16.xpose.msra.mxu0 0
      %793 = vmatpush.bf16.xpose.msra.mxu0 0
      %794 = vmatpush.bf16.xpose.msra.mxu0 0
      %795 = vmatpush.bf16.xpose.msra.mxu0 0
      %796 = vmatpush.bf16.xpose.msra.mxu0 0
      %797 = vmatpush.bf16.xpose.msra.mxu0 %v788
      %798 = vmatmul.bf16.gmra.mxu0 %v785
      %v799 = vpop.f32.mrf.mxu0
      %v800 = vadd.f32 0.0, %v799
      %v801 = vpop.f32.mrf.mxu0
      %802 = vdwg.mxu0
      %v803 = vmul.f32 %v800, 0.35355338
      %v804 = vadd.f32 %v803, %v627
      %v805 = vsel %vm605, %v804, -inf
      %806 = vmax.xlane.f32.xlu0 %v805
      %v807 = vpop.xlane.xlu0 %806
      %v808 = vsub.f32 %v804, %v807
      %v809 = vmul.f32 %v808, 1.442695
      %v810 = vpow.pop %v809
      %v811 = vsel %vm605, %v810, 0.0
      %812 = vadd.xlane.f32.xlu0 %v811
      %v813 = vpop.xlane.xlu0 %812
      %v814 = vrcp.pop %v813
      %v815 = vmul.f32 %v810, %v814
      %v816 = vpack.c.bf16 %v815, %v815
      %817 = vrot.lane.b32.xlu0 %v601, 40
      %v818 = vpop.permute.xlu0 %817
      %v820 = vsel %vm605, %v816, 0
      %v823 = vsel %vm647, %v818, 0
      %825 = vmatpush.bf16.msra.mxu0 0
      %826 = vmatpush.bf16.msra.mxu0 0
      %827 = vmatpush.bf16.msra.mxu0 0
      %828 = vmatpush.bf16.msra.mxu0 0
      %829 = vmatpush.bf16.msra.mxu0 0
      %830 = vmatpush.bf16.msra.mxu0 0
      %831 = vmatpush.bf16.msra.mxu0 0
      %832 = vmatpush.bf16.msra.mxu0 %v823
      %833 = vmatmul.bf16.gmra.mxu0 %v820
      %v834 = vpop.f32.mrf.mxu0
      %v835 = vadd.f32 0.0, %v834
      %v836 = vpop.f32.mrf.mxu0
      %837 = vdwg.mxu0
      %839 = vrot.lane.b32.xlu0 %v719, 8
      %v840 = vpop.permute.xlu0 %839
      %843 = vrot.lane.b32.xlu0 %v777, 16
      %v844 = vpop.permute.xlu0 %843
      %847 = vrot.lane.b32.xlu0 %v835, 24
      %v848 = vpop.permute.xlu0 %847
      %v850 = vsel %vm605, %v661, %v840
      %vm851 = vcmask 130048
      %v852 = vsel %vm851, %v850, %v844
      %vm853 = vcmask 195584
      %v854 = vsel %vm853, %v852, %v848
      %v855 = vld [vmem:[%s6] sm:$0xff]
      %v856 = vld [vmem:[%s6 + $0x8] sm:$0xff]
      %v857 = vld [vmem:[%s6 + $0x10] sm:$0xff]
      %v858 = vld [vmem:[%s6 + $0x18] sm:$0xff]
      %v859 = vpack.c.bf16 %v854, %v854
      %v860 = vpack.c.bf16 %v856, %v855
      %v861 = vpack.c.bf16 %v858, %v857
      %v862 = vld [vmem:[%s7] sm:$0x1]
      %v864 = vperm.slane %v862, 0
      %v867 = vsel %vm535, %v859, 0
      %869 = vmatpush.bf16.msra.mxu0 0
      %870 = vmatpush.bf16.msra.mxu0 0
      %871 = vmatpush.bf16.msra.mxu0 0
      %872 = vmatpush.bf16.msra.mxu0 0
      %873 = vmatpush.bf16.msra.mxu0 0
      %874 = vmatpush.bf16.msra.mxu0 0
      %875 = vmatpush.bf16.msra.mxu0 %v861
      %876 = vmatpush.bf16.msra.mxu0 %v860
      %877 = vmatmul.bf16.gmra.mxu0 %v867
      %v878 = vpop.f32.mrf.mxu0
      %v879 = vadd.f32 %v864, %v878
      %v880 = vpop.f32.mrf.mxu0
      %881 = vdwg.mxu0
      %v882 = vadd.f32 %v879, %v572
      %v883 = vld [vmem:[%s8] sm:$0x1]
      %v884 = vld [vmem:[%s9] sm:$0x1]
      %v885 = vsel %vm535, %v882, 0.0
      %886 = vadd.xlane.f32.xlu0 %v885
      %v887 = vpop.xlane.xlu0 %886
      %v888 = vmul.f32 %v887, %v545
      %v889 = vsub.f32 %v882, %v888
      %v890 = vmul.f32 %v889, %v889
      %v891 = vsel %vm535, %v890, 0.0
      %892 = vadd.xlane.f32.xlu0 %v891
      %v893 = vpop.xlane.xlu0 %892
      %v894 = vmul.f32 %v893, %v545
      %v895 = vadd.f32 %v894, 1e-12
      %v896 = vrsqrt.pop %v895
      %v897 = vmul.f32 %v896, %v895
      %v898 = vmul.f32 %v897, %v896
      %v899 = vmul.f32 0.5, %v898
      %v900 = vsub.f32 1.5, %v899
      %v901 = vmul.f32 %v896, %v900
      %vm902 = vweird.f32 %v895
      %vm903 = vweird.f32 %v896
      %vm904 = vmor %vm902, %vm903
      %v905 = vsel %vm904, %v896, %v901
      %v906 = vmul.f32 %v889, %v905
      %v908 = vperm.slane %v883, 0
      %v910 = vmul.f32 %v906, %v908
      %v912 = vperm.slane %v884, 0
      %v914 = vadd.f32 %v910, %v912
      %v915 = vld [vmem:[%s10] sm:$0xff]
      %v916 = vld [vmem:[%s10 + $0x8] sm:$0xff]
      %v917 = vld [vmem:[%s10 + $0x10] sm:$0xff]
      %v918 = vld [vmem:[%s10 + $0x18] sm:$0xff]
      %v919 = vpack.c.bf16 %v914, %v914
      %v920 = vpack.c.bf16 %v916, %v915
      %v921 = vpack.c.bf16 %v918, %v917
      %v922 = vld [vmem:[%s11] sm:$0x1]
      %v924 = vperm.slane %v922, 0
      %v927 = vsel %vm535, %v919, 0
      %929 = vmatpush.bf16.msra.mxu0 0
      %930 = vmatpush.bf16.msra.mxu0 0
      %931 = vmatpush.bf16.msra.mxu0 0
      %932 = vmatpush.bf16.msra.mxu0 0
      %933 = vmatpush.bf16.msra.mxu0 0
      %934 = vmatpush.bf16.msra.mxu0 0
      %935 = vmatpush.bf16.msra.mxu0 %v921
      %936 = vmatpush.bf16.msra.mxu0 %v920
      %937 = vmatmul.bf16.gmra.mxu0 %v927
      %v938 = vpop.f32.mrf.mxu0
      %v939 = vadd.f32 %v924, %v938
      %v940 = vpop.f32.mrf.mxu0
      %941 = vdwg.mxu0
      %v942 = vmul.f32 %v939, 0.5
      %v943 = vmul.f32 %v939, 0.044715
      %v944 = vmul.f32 %v943, %v939
      %v945 = vmul.f32 %v944, %v939
      %v946 = vadd.f32 %v939, %v945
      %v947 = vmul.f32 %v946, 0.7978846
      %v948 = vtanh.pop %v947
      %v949 = vadd.f32 %v948, 1.0
      %v950 = vmul.f32 %v942, %v949
      %v951 = vld [vmem:[%s12] sm:$0xff]
      %v952 = vld [vmem:[%s12 + $0x8] sm:$0xff]
      %v953 = vld [vmem:[%s12 + $0x10] sm:$0xff]
      %v954 = vld [vmem:[%s12 + $0x18] sm:$0xff]
      %v955 = vld [vmem:[%s12 + $0x20] sm:$0xff]
      %v956 = vld [vmem:[%s12 + $0x28] sm:$0xff]
      %v957 = vld [vmem:[%s12 + $0x30] sm:$0xff]
      %v958 = vld [vmem:[%s12 + $0x38] sm:$0xff]
      %v959 = vpack.c.bf16 %v950, %v950
      %v960 = vpack.c.bf16 %v952, %v951
      %v961 = vpack.c.bf16 %v954, %v953
      %v962 = vpack.c.bf16 %v956, %v955
      %v963 = vpack.c.bf16 %v958, %v957
      %v964 = vld [vmem:[%s13] sm:$0x1]
      %v966 = vperm.slane %v964, 0
      %vm968 = vcmask 523264
      %v970 = vsel %vm968, %v959, 0
      %972 = vmatpush.bf16.msra.mxu0 0
      %973 = vmatpush.bf16.msra.mxu0 0
      %974 = vmatpush.bf16.msra.mxu0 0
      %975 = vmatpush.bf16.msra.mxu0 0
      %976 = vmatpush.bf16.msra.mxu0 %v963
      %977 = vmatpush.bf16.msra.mxu0 %v962
      %978 = vmatpush.bf16.msra.mxu0 %v961
      %979 = vmatpush.bf16.msra.mxu0 %v960
      %980 = vmatmul.bf16.gmra.mxu0 %v970
      %v981 = vpop.f32.mrf.mxu0
      %v982 = vadd.f32 %v966, %v981
      %v983 = vpop.f32.mrf.mxu0
      %984 = vdwg.mxu0
      %v985 = vadd.f32 %v982, %v914
      %v986 = vld [vmem:[%s14] sm:$0x1]
      %v987 = vld [vmem:[%s15] sm:$0x1]
      %v988 = vsel %vm535, %v985, 0.0
      %989 = vadd.xlane.f32.xlu0 %v988
      %v990 = vpop.xlane.xlu0 %989
      %v991 = vmul.f32 %v990, %v545
      %v992 = vsub.f32 %v985, %v991
      %v993 = vmul.f32 %v992, %v992
      %v994 = vsel %vm535, %v993, 0.0
      %995 = vadd.xlane.f32.xlu0 %v994
      %v996 = vpop.xlane.xlu0 %995
      %v997 = vmul.f32 %v996, %v545
      %v998 = vadd.f32 %v997, 1e-12
      %v999 = vrsqrt.pop %v998
      %v1000 = vmul.f32 %v999, %v998
      %v1001 = vmul.f32 %v1000, %v999
      %v1002 = vmul.f32 0.5, %v1001
      %v1003 = vsub.f32 1.5, %v1002
      %v1004 = vmul.f32 %v999, %v1003
      %vm1005 = vweird.f32 %v998
      %vm1006 = vweird.f32 %v999
      %vm1007 = vmor %vm1005, %vm1006
      %v1008 = vsel %vm1007, %v999, %v1004
      %v1009 = vmul.f32 %v992, %v1008
      %v1011 = vperm.slane %v986, 0
      %v1013 = vmul.f32 %v1009, %v1011
      %v1015 = vperm.slane %v987, 0
      %v1017 = vadd.f32 %v1013, %v1015
      %s1018 = scalar_lea.vmem %s4, 32
      %v1019 = vld [vmem:[%s1018] sm:$0xff]
      %v1020 = vld [vmem:[%s1018 + $0x8] sm:$0xff]
      %v1021 = vld [vmem:[%s1018 + $0x10] sm:$0xff]
      %v1022 = vld [vmem:[%s1018 + $0x18] sm:$0xff]
      %v1023 = vpack.c.bf16 %v1017, %v1017
      %v1024 = vpack.c.bf16 %v1020, %v1019
      %v1025 = vpack.c.bf16 %v1022, %v1021
      %s1026 = scalar_lea.vmem %s5, 1
      %v1027 = vld [vmem:[%s1026] sm:$0x1]
      %v1029 = vperm.slane %v1027, 0
      %v1032 = vsel %vm535, %v1023, 0
      %1034 = vmatpush.bf16.msra.mxu0 0
      %1035 = vmatpush.bf16.msra.mxu0 0
      %1036 = vmatpush.bf16.msra.mxu0 0
      %1037 = vmatpush.bf16.msra.mxu0 0
      %1038 = vmatpush.bf16.msra.mxu0 0
      %1039 = vmatpush.bf16.msra.mxu0 0
      %1040 = vmatpush.bf16.msra.mxu0 %v1025
      %1041 = vmatpush.bf16.msra.mxu0 %v1024
      %1042 = vmatmul.bf16.gmra.mxu0 %v1032
      %v1043 = vpop.f32.mrf.mxu0
      %v1044 = vadd.f32 %v1029, %v1043
      %v1045 = vpop.f32.mrf.mxu0
      %1046 = vdwg.mxu0
      %v1047 = vpack.c.bf16 %v1044, %v1044
      %1049 = vrot.lane.b32.xlu0 %v1047, 96
      %v1050 = vpop.permute.xlu0 %1049
      %v1052 = vsel %vm605, %v1047, 0
      %v1055 = vsel %vm605, %v1050, 0
      %1057 = vmatpush.bf16.xpose.msra.mxu0 0
      %1058 = vmatpush.bf16.xpose.msra.mxu0 0
      %1059 = vmatpush.bf16.xpose.msra.mxu0 0
      %1060 = vmatpush.bf16.xpose.msra.mxu0 0
      %1061 = vmatpush.bf16.xpose.msra.mxu0 0
      %1062 = vmatpush.bf16.xpose.msra.mxu0 0
      %1063 = vmatpush.bf16.xpose.msra.mxu0 0
      %1064 = vmatpush.bf16.xpose.msra.mxu0 %v1055
      %1065 = vmatmul.bf16.gmra.mxu0 %v1052
      %v1066 = vpop.f32.mrf.mxu0
      %v1067 = vadd.f32 0.0, %v1066
      %v1068 = vpop.f32.mrf.mxu0
      %1069 = vdwg.mxu0
      %v1070 = vmul.f32 %v1067, 0.35355338
      %v1071 = vadd.f32 %v1070, %v627
      %v1072 = vsel %vm605, %v1071, -inf
      %1073 = vmax.xlane.f32.xlu0 %v1072
      %v1074 = vpop.xlane.xlu0 %1073
      %v1075 = vsub.f32 %v1071, %v1074
      %v1076 = vmul.f32 %v1075, 1.442695
      %v1077 = vpow.pop %v1076
      %v1078 = vsel %vm605, %v1077, 0.0
      %1079 = vadd.xlane.f32.xlu0 %v1078
      %v1080 = vpop.xlane.xlu0 %1079
      %v1081 = vrcp.pop %v1080
      %v1082 = vmul.f32 %v1077, %v1081
      %v1083 = vpack.c.bf16 %v1082, %v1082
      %1084 = vrot.lane.b32.xlu0 %v1047, 64
      %v1085 = vpop.permute.xlu0 %1084
      %v1087 = vsel %vm605, %v1083, 0
      %v1090 = vsel %vm647, %v1085, 0
      %1092 = vmatpush.bf16.msra.mxu0 0
      %1093 = vmatpush.bf16.msra.mxu0 0
      %1094 = vmatpush.bf16.msra.mxu0 0
      %1095 = vmatpush.bf16.msra.mxu0 0
      %1096 = vmatpush.bf16.msra.mxu0 0
      %1097 = vmatpush.bf16.msra.mxu0 0
      %1098 = vmatpush.bf16.msra.mxu0 0
      %1099 = vmatpush.bf16.msra.mxu0 %v1090
      %1100 = vmatmul.bf16.gmra.mxu0 %v1087
      %v1101 = vpop.f32.mrf.mxu0
      %v1102 = vadd.f32 0.0, %v1101
      %v1103 = vpop.f32.mrf.mxu0
      %1104 = vdwg.mxu0
      %1105 = vrot.lane.b32.xlu0 %v1047, 120
      %v1106 = vpop.permute.xlu0 %1105
      %1107 = vrot.lane.b32.xlu0 %v1047, 88
      %v1108 = vpop.permute.xlu0 %1107
      %v1110 = vsel %vm605, %v1106, 0
      %v1113 = vsel %vm605, %v1108, 0
      %1115 = vmatpush.bf16.xpose.msra.mxu0 0
      %1116 = vmatpush.bf16.xpose.msra.mxu0 0
      %1117 = vmatpush.bf16.xpose.msra.mxu0 0
      %1118 = vmatpush.bf16.xpose.msra.mxu0 0
      %1119 = vmatpush.bf16.xpose.msra.mxu0 0
      %1120 = vmatpush.bf16.xpose.msra.mxu0 0
      %1121 = vmatpush.bf16.xpose.msra.mxu0 0
      %1122 = vmatpush.bf16.xpose.msra.mxu0 %v1113
      %1123 = vmatmul.bf16.gmra.mxu0 %v1110
      %v1124 = vpop.f32.mrf.mxu0
      %v1125 = vadd.f32 0.0, %v1124
      %v1126 = vpop.f32.mrf.mxu0
      %1127 = vdwg.mxu0
      %v1128 = vmul.f32 %v1125, 0.35355338
      %v1129 = vadd.f32 %v1128, %v627
      %v1130 = vsel %vm605, %v1129, -inf
      %1131 = vmax.xlane.f32.xlu0 %v1130
      %v1132 = vpop.xlane.xlu0 %1131
      %v1133 = vsub.f32 %v1129, %v1132
      %v1134 = vmul.f32 %v1133, 1.442695
      %v1135 = vpow.pop %v1134
      %v1136 = vsel %vm605, %v1135, 0.0
      %1137 = vadd.xlane.f32.xlu0 %v1136
      %v1138 = vpop.xlane.xlu0 %1137
      %v1139 = vrcp.pop %v1138
      %v1140 = vmul.f32 %v1135, %v1139
      %v1141 = vpack.c.bf16 %v1140, %v1140
      %1142 = vrot.lane.b32.xlu0 %v1047, 56
      %v1143 = vpop.permute.xlu0 %1142
      %v1145 = vsel %vm605, %v1141, 0
      %v1148 = vsel %vm647, %v1143, 0
      %1150 = vmatpush.bf16.msra.mxu0 0
      %1151 = vmatpush.bf16.msra.mxu0 0
      %1152 = vmatpush.bf16.msra.mxu0 0
      %1153 = vmatpush.bf16.msra.mxu0 0
      %1154 = vmatpush.bf16.msra.mxu0 0
      %1155 = vmatpush.bf16.msra.mxu0 0
      %1156 = vmatpush.bf16.msra.mxu0 0
      %1157 = vmatpush.bf16.msra.mxu0 %v1148
      %1158 = vmatmul.bf16.gmra.mxu0 %v1145
      %v1159 = vpop.f32.mrf.mxu0
      %v1160 = vadd.f32 0.0, %v1159
      %v1161 = vpop.f32.mrf.mxu0
      %1162 = vdwg.mxu0
      %1163 = vrot.lane.b32.xlu0 %v1047, 112
      %v1164 = vpop.permute.xlu0 %1163
      %1165 = vrot.lane.b32.xlu0 %v1047, 80
      %v1166 = vpop.permute.xlu0 %1165
      %v1168 = vsel %vm605, %v1164, 0
      %v1171 = vsel %vm605, %v1166, 0
      %1173 = vmatpush.bf16.xpose.msra.mxu0 0
      %1174 = vmatpush.bf16.xpose.msra.mxu0 0
      %1175 = vmatpush.bf16.xpose.msra.mxu0 0
      %1176 = vmatpush.bf16.xpose.msra.mxu0 0
      %1177 = vmatpush.bf16.xpose.msra.mxu0 0
      %1178 = vmatpush.bf16.xpose.msra.mxu0 0
      %1179 = vmatpush.bf16.xpose.msra.mxu0 0
      %1180 = vmatpush.bf16.xpose.msra.mxu0 %v1171
      %1181 = vmatmul.bf16.gmra.mxu0 %v1168
      %v1182 = vpop.f32.mrf.mxu0
      %v1183 = vadd.f32 0.0, %v1182
      %v1184 = vpop.f32.mrf.mxu0
      %1185 = vdwg.mxu0
      %v1186 = vmul.f32 %v1183, 0.35355338
      %v1187 = vadd.f32 %v1186, %v627
      %v1188 = vsel %vm605, %v1187, -inf
      %1189 = vmax.xlane.f32.xlu0 %v1188
      %v1190 = vpop.xlane.xlu0 %1189
      %v1191 = vsub.f32 %v1187, %v1190
      %v1192 = vmul.f32 %v1191, 1.442695
      %v1193 = vpow.pop %v1192
      %v1194 = vsel %vm605, %v1193, 0.0
      %1195 = vadd.xlane.f32.xlu0 %v1194
      %v1196 = vpop.xlane.xlu0 %1195
      %v1197 = vrcp.pop %v1196
      %v1198 = vmul.f32 %v1193, %v1197
      %v1199 = vpack.c.bf16 %v1198, %v1198
      %1200 = vrot.lane.b32.xlu0 %v1047, 48
      %v1201 = vpop.permute.xlu0 %1200
      %v1203 = vsel %vm605, %v1199, 0
      %v1206 = vsel %vm647, %v1201, 0
      %1208 = vmatpush.bf16.msra.mxu0 0
      %1209 = vmatpush.bf16.msra.mxu0 0
      %1210 = vmatpush.bf16.msra.mxu0 0
      %1211 = vmatpush.bf16.msra.mxu0 0
      %1212 = vmatpush.bf16.msra.mxu0 0
      %1213 = vmatpush.bf16.msra.mxu0 0
      %1214 = vmatpush.bf16.msra.mxu0 0
      %1215 = vmatpush.bf16.msra.mxu0 %v1206
      %1216 = vmatmul.bf16.gmra.mxu0 %v1203
      %v1217 = vpop.f32.mrf.mxu0
      %v1218 = vadd.f32 0.0, %v1217
      %v1219 = vpop.f32.mrf.mxu0
      %1220 = vdwg.mxu0
      %1221 = vrot.lane.b32.xlu0 %v1047, 104
      %v1222 = vpop.permute.xlu0 %1221
      %1223 = vrot.lane.b32.xlu0 %v1047, 72
      %v1224 = vpop.permute.xlu0 %1223
      %v1226 = vsel %vm605, %v1222, 0
      %v1229 = vsel %vm605, %v1224, 0
      %1231 = vmatpush.bf16.xpose.msra.mxu0 0
      %1232 = vmatpush.bf16.xpose.msra.mxu0 0
      %1233 = vmatpush.bf16.xpose.msra.mxu0 0
      %1234 = vmatpush.bf16.xpose.msra.mxu0 0
      %1235 = vmatpush.bf16.xpose.msra.mxu0 0
      %1236 = vmatpush.bf16.xpose.msra.mxu0 0
      %1237 = vmatpush.bf16.xpose.msra.mxu0 0
      %1238 = vmatpush.bf16.xpose.msra.mxu0 %v1229
      %1239 = vmatmul.bf16.gmra.mxu0 %v1226
      %v1240 = vpop.f32.mrf.mxu0
      %v1241 = vadd.f32 0.0, %v1240
      %v1242 = vpop.f32.mrf.mxu0
      %1243 = vdwg.mxu0
      %v1244 = vmul.f32 %v1241, 0.35355338
      %v1245 = vadd.f32 %v1244, %v627
      %v1246 = vsel %vm605, %v1245, -inf
      %1247 = vmax.xlane.f32.xlu0 %v1246
      %v1248 = vpop.xlane.xlu0 %1247
      %v1249 = vsub.f32 %v1245, %v1248
      %v1250 = vmul.f32 %v1249, 1.442695
      %v1251 = vpow.pop %v1250
      %v1252 = vsel %vm605, %v1251, 0.0
      %1253 = vadd.xlane.f32.xlu0 %v1252
      %v1254 = vpop.xlane.xlu0 %1253
      %v1255 = vrcp.pop %v1254
      %v1256 = vmul.f32 %v1251, %v1255
      %v1257 = vpack.c.bf16 %v1256, %v1256
      %1258 = vrot.lane.b32.xlu0 %v1047, 40
      %v1259 = vpop.permute.xlu0 %1258
      %v1261 = vsel %vm605, %v1257, 0
      %v1264 = vsel %vm647, %v1259, 0
      %1266 = vmatpush.bf16.msra.mxu0 0
      %1267 = vmatpush.bf16.msra.mxu0 0
      %1268 = vmatpush.bf16.msra.mxu0 0
      %1269 = vmatpush.bf16.msra.mxu0 0
      %1270 = vmatpush.bf16.msra.mxu0 0
      %1271 = vmatpush.bf16.msra.mxu0 0
      %1272 = vmatpush.bf16.msra.mxu0 0
      %1273 = vmatpush.bf16.msra.mxu0 %v1264
      %1274 = vmatmul.bf16.gmra.mxu0 %v1261
      %v1275 = vpop.f32.mrf.mxu0
      %v1276 = vadd.f32 0.0, %v1275
      %v1277 = vpop.f32.mrf.mxu0
      %1278 = vdwg.mxu0
      %1280 = vrot.lane.b32.xlu0 %v1160, 8
      %v1281 = vpop.permute.xlu0 %1280
      %1284 = vrot.lane.b32.xlu0 %v1218, 16
      %v1285 = vpop.permute.xlu0 %1284
      %1288 = vrot.lane.b32.xlu0 %v1276, 24
      %v1289 = vpop.permute.xlu0 %1288
      %v1291 = vsel %vm605, %v1102, %v1281
      %v1292 = vsel %vm851, %v1291, %v1285
      %v1293 = vsel %vm853, %v1292, %v1289
      %s1294 = scalar_lea.vmem %s6, 32
      %v1295 = vld [vmem:[%s1294] sm:$0xff]
      %v1296 = vld [vmem:[%s1294 + $0x8] sm:$0xff]
      %v1297 = vld [vmem:[%s1294 + $0x10] sm:$0xff]
      %v1298 = vld [vmem:[%s1294 + $0x18] sm:$0xff]
      %v1299 = vpack.c.bf16 %v1293, %v1293
      %v1300 = vpack.c.bf16 %v1296, %v1295
      %v1301 = vpack.c.bf16 %v1298, %v1297
      %s1302 = scalar_lea.vmem %s7, 1
      %v1303 = vld [vmem:[%s1302] sm:$0x1]
      %v1305 = vperm.slane %v1303, 0
      %v1308 = vsel %vm535, %v1299, 0
      %1310 = vmatpush.bf16.msra.mxu0 0
      %1311 = vmatpush.bf16.msra.mxu0 0
      %1312 = vmatpush.bf16.msra.mxu0 0
      %1313 = vmatpush.bf16.msra.mxu0 0
      %1314 = vmatpush.bf16.msra.mxu0 0
      %1315 = vmatpush.bf16.msra.mxu0 0
      %1316 = vmatpush.bf16.msra.mxu0 %v1301
      %1317 = vmatpush.bf16.msra.mxu0 %v1300
      %1318 = vmatmul.bf16.gmra.mxu0 %v1308
      %v1319 = vpop.f32.mrf.mxu0
      %v1320 = vadd.f32 %v1305, %v1319
      %v1321 = vpop.f32.mrf.mxu0
      %1322 = vdwg.mxu0
      %v1323 = vadd.f32 %v1320, %v1017
      %s1324 = scalar_lea.vmem %s8, 1
      %v1325 = vld [vmem:[%s1324] sm:$0x1]
      %s1326 = scalar_lea.vmem %s9, 1
      %v1327 = vld [vmem:[%s1326] sm:$0x1]
      %v1328 = vsel %vm535, %v1323, 0.0
      %1329 = vadd.xlane.f32.xlu0 %v1328
      %v1330 = vpop.xlane.xlu0 %1329
      %v1331 = vmul.f32 %v1330, %v545
      %v1332 = vsub.f32 %v1323, %v1331
      %v1333 = vmul.f32 %v1332, %v1332
      %v1334 = vsel %vm535, %v1333, 0.0
      %1335 = vadd.xlane.f32.xlu0 %v1334
      %v1336 = vpop.xlane.xlu0 %1335
      %v1337 = vmul.f32 %v1336, %v545
      %v1338 = vadd.f32 %v1337, 1e-12
      %v1339 = vrsqrt.pop %v1338
      %v1340 = vmul.f32 %v1339, %v1338
      %v1341 = vmul.f32 %v1340, %v1339
      %v1342 = vmul.f32 0.5, %v1341
      %v1343 = vsub.f32 1.5, %v1342
      %v1344 = vmul.f32 %v1339, %v1343
      %vm1345 = vweird.f32 %v1338
      %vm1346 = vweird.f32 %v1339
      %vm1347 = vmor %vm1345, %vm1346
      %v1348 = vsel %vm1347, %v1339, %v1344
      %v1349 = vmul.f32 %v1332, %v1348
      %v1351 = vperm.slane %v1325, 0
      %v1353 = vmul.f32 %v1349, %v1351
      %v1355 = vperm.slane %v1327, 0
      %v1357 = vadd.f32 %v1353, %v1355
      %s1358 = scalar_lea.vmem %s10, 32
      %v1359 = vld [vmem:[%s1358] sm:$0xff]
      %v1360 = vld [vmem:[%s1358 + $0x8] sm:$0xff]
      %v1361 = vld [vmem:[%s1358 + $0x10] sm:$0xff]
      %v1362 = vld [vmem:[%s1358 + $0x18] sm:$0xff]
      %v1363 = vpack.c.bf16 %v1357, %v1357
      %v1364 = vpack.c.bf16 %v1360, %v1359
      %v1365 = vpack.c.bf16 %v1362, %v1361
      %s1366 = scalar_lea.vmem %s11, 1
      %v1367 = vld [vmem:[%s1366] sm:$0x1]
      %v1369 = vperm.slane %v1367, 0
      %v1372 = vsel %vm535, %v1363, 0
      %1374 = vmatpush.bf16.msra.mxu0 0
      %1375 = vmatpush.bf16.msra.mxu0 0
      %1376 = vmatpush.bf16.msra.mxu0 0
      %1377 = vmatpush.bf16.msra.mxu0 0
      %1378 = vmatpush.bf16.msra.mxu0 0
      %1379 = vmatpush.bf16.msra.mxu0 0
      %1380 = vmatpush.bf16.msra.mxu0 %v1365
      %1381 = vmatpush.bf16.msra.mxu0 %v1364
      %1382 = vmatmul.bf16.gmra.mxu0 %v1372
      %v1383 = vpop.f32.mrf.mxu0
      %v1384 = vadd.f32 %v1369, %v1383
      %v1385 = vpop.f32.mrf.mxu0
      %1386 = vdwg.mxu0
      %v1387 = vmul.f32 %v1384, 0.5
      %v1388 = vmul.f32 %v1384, 0.044715
      %v1389 = vmul.f32 %v1388, %v1384
      %v1390 = vmul.f32 %v1389, %v1384
      %v1391 = vadd.f32 %v1384, %v1390
      %v1392 = vmul.f32 %v1391, 0.7978846
      %v1393 = vtanh.pop %v1392
      %v1394 = vadd.f32 %v1393, 1.0
      %v1395 = vmul.f32 %v1387, %v1394
      %s1396 = scalar_lea.vmem %s12, 64
      %v1397 = vld [vmem:[%s1396] sm:$0xff]
      %v1398 = vld [vmem:[%s1396 + $0x8] sm:$0xff]
      %v1399 = vld [vmem:[%s1396 + $0x10] sm:$0xff]
      %v1400 = vld [vmem:[%s1396 + $0x18] sm:$0xff]
      %v1401 = vld [vmem:[%s1396 + $0x20] sm:$0xff]
      %v1402 = vld [vmem:[%s1396 + $0x28] sm:$0xff]
      %v1403 = vld [vmem:[%s1396 + $0x30] sm:$0xff]
      %v1404 = vld [vmem:[%s1396 + $0x38] sm:$0xff]
      %v1405 = vpack.c.bf16 %v1395, %v1395
      %v1406 = vpack.c.bf16 %v1398, %v1397
      %v1407 = vpack.c.bf16 %v1400, %v1399
      %v1408 = vpack.c.bf16 %v1402, %v1401
      %v1409 = vpack.c.bf16 %v1404, %v1403
      %s1410 = scalar_lea.vmem %s13, 1
      %v1411 = vld [vmem:[%s1410] sm:$0x1]
      %v1413 = vperm.slane %v1411, 0
      %v1416 = vsel %vm968, %v1405, 0
      %1418 = vmatpush.bf16.msra.mxu0 0
      %1419 = vmatpush.bf16.msra.mxu0 0
      %1420 = vmatpush.bf16.msra.mxu0 0
      %1421 = vmatpush.bf16.msra.mxu0 0
      %1422 = vmatpush.bf16.msra.mxu0 %v1409
      %1423 = vmatpush.bf16.msra.mxu0 %v1408
      %1424 = vmatpush.bf16.msra.mxu0 %v1407
      %1425 = vmatpush.bf16.msra.mxu0 %v1406
      %1426 = vmatmul.bf16.gmra.mxu0 %v1416
      %v1427 = vpop.f32.mrf.mxu0
      %v1428 = vadd.f32 %v1413, %v1427
      %v1429 = vpop.f32.mrf.mxu0
      %1430 = vdwg.mxu0
      %v1431 = vadd.f32 %v1428, %v1357
      %s1432 = scalar_lea.vmem %s14, 1
      %v1433 = vld [vmem:[%s1432] sm:$0x1]
      %s1434 = scalar_lea.vmem %s15, 1
      %v1435 = vld [vmem:[%s1434] sm:$0x1]
      %v1436 = vsel %vm535, %v1431, 0.0
      %1437 = vadd.xlane.f32.xlu0 %v1436
      %v1438 = vpop.xlane.xlu0 %1437
      %v1439 = vmul.f32 %v1438, %v545
      %v1440 = vsub.f32 %v1431, %v1439
      %v1441 = vmul.f32 %v1440, %v1440
      %v1442 = vsel %vm535, %v1441, 0.0
      %1443 = vadd.xlane.f32.xlu0 %v1442
      %v1444 = vpop.xlane.xlu0 %1443
      %v1445 = vmul.f32 %v1444, %v545
      %v1446 = vadd.f32 %v1445, 1e-12
      %v1447 = vrsqrt.pop %v1446
      %v1448 = vmul.f32 %v1447, %v1446
      %v1449 = vmul.f32 %v1448, %v1447
      %v1450 = vmul.f32 0.5, %v1449
      %v1451 = vsub.f32 1.5, %v1450
      %v1452 = vmul.f32 %v1447, %v1451
      %vm1453 = vweird.f32 %v1446
      %vm1454 = vweird.f32 %v1447
      %vm1455 = vmor %vm1453, %vm1454
      %v1456 = vsel %vm1455, %v1447, %v1452
      %v1457 = vmul.f32 %v1440, %v1456
      %v1459 = vperm.slane %v1433, 0
      %v1461 = vmul.f32 %v1457, %v1459
      %v1463 = vperm.slane %v1435, 0
      %v1465 = vadd.f32 %v1461, %v1463
      %1466 = vst.msk [vmem:[%s530] sm:$0xff] %vm535, %v1465
      %p1467 = scmp.lt.s32.totalorder %s27, 1
      %s1468 = scalar_select %p1467, %s27, 1
      %s1469 = smul.addr %s1468, 8
      %s1470 = scalar_lea.vmem %s16, %s1469
      // Predicated region
      $region85: #{bert_forward.1} parent=83 // pred_check
        %p1471 = pneg %p391
      $region86: #{bert_forward.1} parent=83 // pred_check_branch
        %1473 = sbr.rel (%p1471) target = $region88
      $region87: #{bert_forward.1} parent=83 // pred_region
        _
      $region88: #{bert_forward.1} parent=83 // pred_fallthru
        _
    $region84: #{bert_forward.1} parent=5 // pred_fallthru
      _
    %p1474 = scmp.le.s32.totalorder 2, %s22
    // Predicated region
    $region89: #{bert_forward.1} parent=5 // pred_check
      %p1475 = pneg %p1474
    $region90: #{bert_forward.1} parent=5 // pred_check_branch
      %1477 = sbr.rel (%p1475) target = $region92
    $region91: #{bert_forward.1} parent=5 // pred_region
      %s1478 = ssub.s32 %s22, 2
      // Predicated region
      $region93: #{bert_forward.1} parent=91 // pred_check
        %p1479 = pneg %p397
      $region94: #{bert_forward.1} parent=91 // pred_check_branch
        %1481 = sbr.rel (%p1479) target = $region96
      $region95: #{bert_forward.1} parent=91 // pred_region
        %p1482 = scmp.lt.s32.totalorder %s28, 1
        %s1483 = scalar_select %p1482, %s28, 1
        %s1484 = smul.addr %s1483, 8
        %s1485 = scalar_lea.vmem %s16, %s1484
      $region96: #{bert_forward.1} parent=91 // pred_fallthru
        _
    $region92: #{bert_forward.1} parent=5 // pred_fallthru
      _
  $region6: #{bert_forward.1} parent=0 // loop_footer
    %s26 = sadd.s32 1, %s22
  $region7: #{bert_forward.1} parent=0 // loop_footer_branch
    %21 = sbr.rel target = $region3
  $region8: #{bert_forward.1} parent=0 // loop_exit
    _

</llo_original>
